<compile_context>
chip_gen: v6e
topology: v6e:2x2x1
jax: 0.10.0
libtpu: 0.0.40
codegen_flags: <defaults>
</compile_context>

<pallas_src>
import functools
import math

import jax
import jax.numpy as jnp
from jax.experimental import pallas as pl
from jax.experimental.pallas import tpu as pltpu


# v5e's default scoped-VMEM limit is only 16 MiB; raise it so the larger
# double-buffered dense tiles keep deep pipelining on every chip.  64 MiB does
# not exceed physical VMEM on v5e/v6e (128 MiB) or v7x (64 MiB).
_VMEM_LIMIT = 64 * 1024 * 1024


def _tile(dim, target, align):
    """Tile picker that always yields a legal BlockSpec dim.

    Returns the full dim (always legal) if it is <= target, otherwise the
    largest multiple of `align` <= target that evenly divides dim, otherwise
    falls back to the full dim.
    """
    if dim <= target:
        return dim
    t = (target // align) * align
    while t >= align:
        if dim % t == 0:
            return t
        t -= align
    return dim


# ----------------------------- Dense kernels --------------------------------

def _dense_kernel(x_ref, w_ref, b_ref, o_ref, acc_ref, *, activation):
    """Tiled matmul with K accumulation; bias (+ activation) on finalize."""
    @pl.when(pl.program_id(2) == 0)
    def _():
        acc_ref[...] = jnp.zeros_like(acc_ref)

    acc_ref[...] += jnp.dot(
        x_ref[...].astype(jnp.bfloat16), w_ref[...].astype(jnp.bfloat16),
        preferred_element_type=jnp.float32)

    @pl.when(pl.program_id(2) == pl.num_programs(2) - 1)
    def _():
        y = acc_ref[...] + b_ref[...]
        if activation == "gelu":
            # TODO(synk): RoBERTa uses exact erf-GELU; tanh approximation kept
            # here for guaranteed Mosaic lowering (EUP tanh path).
            y = 0.5 * y * (1.0 + jnp.tanh(
                0.7978845608028654 * (y + 0.044715 * y * y * y)))
        elif activation == "tanh":
            y = jnp.tanh(y)
        o_ref[...] = y.astype(o_ref.dtype)


def dense_act(x, w, b, activation=None, out_dtype=jnp.bfloat16,
              tm=512, tn=512, tk=1024):
    """y = act(x @ w + b); x/w consumed bf16, accumulate f32, emit out_dtype."""
    M, K = x.shape
    K2, N = w.shape
    assert K == K2
    tm, tn, tk = _tile(M, tm, 16), _tile(N, tn, 128), _tile(K, tk, 128)
    kernel = functools.partial(_dense_kernel, activation=activation)
    return pl.pallas_call(
        kernel,
        out_shape=jax.ShapeDtypeStruct((M, N), out_dtype),
        grid=(M // tm, N // tn, K // tk),
        in_specs=[
            pl.BlockSpec((tm, tk), lambda i, j, k: (i, k)),
            pl.BlockSpec((tk, tn), lambda i, j, k: (k, j)),
            pl.BlockSpec((1, tn), lambda i, j, k: (0, j)),
        ],
        out_specs=pl.BlockSpec((tm, tn), lambda i, j, k: (i, j)),
        scratch_shapes=[pltpu.VMEM((tm, tn), jnp.float32)],
        compiler_params=pltpu.CompilerParams(
            dimension_semantics=("parallel", "parallel", "arbitrary"),
            vmem_limit_bytes=_VMEM_LIMIT),
    )(x, w, b.reshape(1, N))


def _dense_res_ln_kernel(x_ref, w_ref, b_ref, r_ref, g_ref, bt_ref,
                         o_ref, acc_ref, *, eps):
    """Tiled matmul; finalize = bias + residual + LayerNorm (fused epilogue)."""
    @pl.when(pl.program_id(1) == 0)
    def _():
        acc_ref[...] = jnp.zeros_like(acc_ref)

    acc_ref[...] += jnp.dot(
        x_ref[...].astype(jnp.bfloat16), w_ref[...].astype(jnp.bfloat16),
        preferred_element_type=jnp.float32)

    @pl.when(pl.program_id(1) == pl.num_programs(1) - 1)
    def _():
        # dropout(p=0.1) before the residual add: identity at inference.
        y = acc_ref[...] + b_ref[...] + r_ref[...].astype(jnp.float32)
        mean = jnp.mean(y, axis=-1, keepdims=True)
        yc = y - mean
        var = jnp.mean(yc * yc, axis=-1, keepdims=True)
        o_ref[...] = ((yc * jax.lax.rsqrt(var + eps)) * g_ref[...]
                      + bt_ref[...]).astype(o_ref.dtype)


def dense_res_ln(x, w, b, res, g, beta, eps=1e-5, tm=512, tk=1024):
    """LayerNorm((x @ w + b) + res) with gamma/beta, all in one kernel (bf16 out)."""
    M, K = x.shape
    K2, N = w.shape
    assert K == K2
    tm, tk = _tile(M, tm, 16), _tile(K, tk, 128)
    kernel = functools.partial(_dense_res_ln_kernel, eps=eps)
    return pl.pallas_call(
        kernel,
        out_shape=jax.ShapeDtypeStruct((M, N), jnp.bfloat16),
        grid=(M // tm, K // tk),
        in_specs=[
            pl.BlockSpec((tm, tk), lambda i, k: (i, k)),
            pl.BlockSpec((tk, N), lambda i, k: (k, 0)),
            pl.BlockSpec((1, N), lambda i, k: (0, 0)),
            pl.BlockSpec((tm, N), lambda i, k: (i, 0)),
            pl.BlockSpec((1, N), lambda i, k: (0, 0)),
            pl.BlockSpec((1, N), lambda i, k: (0, 0)),
        ],
        out_specs=pl.BlockSpec((tm, N), lambda i, k: (i, 0)),
        scratch_shapes=[pltpu.VMEM((tm, N), jnp.float32)],
        compiler_params=pltpu.CompilerParams(
            dimension_semantics=("parallel", "arbitrary"),
            vmem_limit_bytes=_VMEM_LIMIT),
    )(x, w, b.reshape(1, N), res, g.reshape(1, N), beta.reshape(1, N))


def _layernorm_kernel(x_ref, g_ref, b_ref, o_ref, *, eps):
    x = x_ref[...].astype(jnp.float32)
    mean = jnp.mean(x, axis=-1, keepdims=True)
    xc = x - mean
    var = jnp.mean(xc * xc, axis=-1, keepdims=True)
    o_ref[...] = ((xc * jax.lax.rsqrt(var + eps)) * g_ref[...]
                  + b_ref[...]).astype(o_ref.dtype)


def layernorm(x, g, b, eps=1e-5, tm=512):
    """Standalone LayerNorm (embeddings); emits bf16 activation stream."""
    M, D = x.shape
    tm = _tile(M, tm, 16)
    kernel = functools.partial(_layernorm_kernel, eps=eps)
    return pl.pallas_call(
        kernel,
        out_shape=jax.ShapeDtypeStruct((M, D), jnp.bfloat16),
        grid=(M // tm,),
        in_specs=[
            pl.BlockSpec((tm, D), lambda i: (i, 0)),
            pl.BlockSpec((1, D), lambda i: (0, 0)),
            pl.BlockSpec((1, D), lambda i: (0, 0)),
        ],
        out_specs=pl.BlockSpec((tm, D), lambda i: (i, 0)),
        compiler_params=pltpu.CompilerParams(
            dimension_semantics=("parallel",),
            vmem_limit_bytes=_VMEM_LIMIT),
    )(x, g.reshape(1, D), b.reshape(1, D))


# ----------------------------- Attention ------------------------------------

def _mha_heads(q_all, k_all, v_all, bias, o_ref, heads, dh, scale):
    """Per-head attention over a head-group block; per-head direct stores."""
    for h in range(heads):
        lo = h * dh
        q = q_all[:, lo:lo + dh]                       # (S, Dh) bf16
        k = k_all[:, lo:lo + dh]
        v = v_all[:, lo:lo + dh]
        # Fold 1/sqrt(Dh) into q (small) instead of scaling the (S,S) scores.
        qs = (q.astype(jnp.float32) * scale).astype(jnp.bfloat16)
        # Contract dim 1 of q against dim 1 of k: no k.T / XLU transpose.
        s = jax.lax.dot_general(qs, k, (((1,), (1,)), ((), ())),
                                preferred_element_type=jnp.float32)
        s = s + bias                                   # additive mask, f32
        s = s - jnp.max(s, axis=-1, keepdims=True)
        p = jnp.exp(s)
        inv = pl.reciprocal(jnp.sum(p, axis=-1, keepdims=True), approx=True)
        p = (p * inv).astype(jnp.bfloat16)
        ctx = jnp.dot(p, v, preferred_element_type=jnp.float32)
        o_ref[:, lo:lo + dh] = ctx.astype(o_ref.dtype)  # no trailing concat


def _attn_group_kernel(q_ref, k_ref, v_ref, bias_ref, o_ref, *, heads, dh, scale):
    """One (batch, head-group) grid point; q/k/v refs are 128-lane slices."""
    _mha_heads(q_ref[...], k_ref[...], v_ref[...], bias_ref[...],
               o_ref, heads, dh, scale)


def _attn_full_kernel(qkv_ref, bias_ref, o_ref, *, n_heads, dh, scale):
    """Fallback: one batch per grid point, full-H qkv block, loop all heads."""
    H = o_ref.shape[-1]
    _mha_heads(qkv_ref[:, 0:H], qkv_ref[:, H:2 * H], qkv_ref[:, 2 * H:3 * H],
               bias_ref[...], o_ref, n_heads, dh, scale)


def attention(qkv, bias, n_heads):
    """qkv: (B*S, 3H) bf16 fused projection; bias: (B, 1, S) f32.

    Returns (B*S, H) bf16.  When H is a multiple of 128 the heads are split
    into 128-lane groups mapped onto a (B, n_groups) parallel grid (feeds
    megacore / v7x dual TC, keeps q/k/v reads and the output stores lane-
    aligned); otherwise a per-batch full-H fallback is used.
    """
    M, H3 = qkv.shape
    H = H3 // 3
    B = bias.shape[0]
    S = M // B
    Dh = H // n_heads
    scale = 1.0 / math.sqrt(Dh)

    group_w = 128
    if H % group_w == 0 and group_w % Dh == 0:
        n_groups = H // group_w
        heads_per_group = group_w // Dh
        kernel = functools.partial(_attn_group_kernel, heads=heads_per_group,
                                   dh=Dh, scale=scale)
        return pl.pallas_call(
            kernel,
            out_shape=jax.ShapeDtypeStruct((M, H), jnp.bfloat16),
            grid=(B, n_groups),
            in_specs=[
                pl.BlockSpec((S, group_w), lambda b, g: (b, g)),                   # q
                pl.BlockSpec((S, group_w), lambda b, g: (b, g + n_groups)),        # k
                pl.BlockSpec((S, group_w), lambda b, g: (b, g + 2 * n_groups)),    # v
                pl.BlockSpec((None, 1, S), lambda b, g: (b, 0, 0)),                # mask
            ],
            out_specs=pl.BlockSpec((S, group_w), lambda b, g: (b, g)),
            compiler_params=pltpu.CompilerParams(
                dimension_semantics=("parallel", "parallel"),
                vmem_limit_bytes=_VMEM_LIMIT),
        )(qkv, qkv, qkv, bias)

    # TODO(synk): for long sequences on v7x (64 MiB VMEM) this monolithic
    # per-batch block should become a flash-style KV-tiled online softmax.
    kernel = functools.partial(_attn_full_kernel, n_heads=n_heads, dh=Dh,
                               scale=scale)
    return pl.pallas_call(
        kernel,
        out_shape=jax.ShapeDtypeStruct((M, H), jnp.bfloat16),
        grid=(B,),
        in_specs=[
            pl.BlockSpec((S, H3), lambda b: (b, 0)),
            pl.BlockSpec((None, 1, S), lambda b: (b, 0, 0)),
        ],
        out_specs=pl.BlockSpec((S, H), lambda b: (b, 0)),
        compiler_params=pltpu.CompilerParams(
            dimension_semantics=("parallel",),
            vmem_limit_bytes=_VMEM_LIMIT),
    )(qkv, bias)


# ----------------------------- Pooler + regressor ---------------------------

def _pool_reg_kernel(x_ref, pw_ref, pb_ref, rw_ref, rb_ref, o_ref):
    """Fused pooler tanh(W @ h_cls + b) -> dropout(identity) -> Linear(H, 1)."""
    x = x_ref[...].astype(jnp.bfloat16)
    pooled = jnp.tanh(
        jnp.dot(x, pw_ref[...], preferred_element_type=jnp.float32)
        + pb_ref[...])
    # nn.Dropout(0.1): identity at inference.
    o_ref[...] = (jnp.dot(pooled.astype(jnp.bfloat16), rw_ref[...],
                          preferred_element_type=jnp.float32) + rb_ref[...])


def pooler_regressor(cls, pw, pb, rw, rb):
    B, H = cls.shape
    return pl.pallas_call(
        _pool_reg_kernel,
        out_shape=jax.ShapeDtypeStruct((B, 1), jnp.float32),
        grid=(1,),
        in_specs=[
            pl.BlockSpec((B, H), lambda i: (0, 0)),
            pl.BlockSpec((H, H), lambda i: (0, 0)),
            pl.BlockSpec((1, H), lambda i: (0, 0)),
            pl.BlockSpec((H, 1), lambda i: (0, 0)),
            pl.BlockSpec((1, 1), lambda i: (0, 0)),
        ],
        out_specs=pl.BlockSpec((B, 1), lambda i: (0, 0)),
        compiler_params=pltpu.CompilerParams(vmem_limit_bytes=_VMEM_LIMIT),
    )(cls, pw, pb.reshape(1, H), rw, rb.reshape(1, 1))


# ----------------------------- Model (glue) ---------------------------------

def encoder_layer(h, p, bias, n_heads):
    # Fused Q|K|V projection -> (M, 3H) bf16 slab via the big-tile dense path.
    qkv = dense_act(h, p["qkv_w"], p["qkv_b"], out_dtype=jnp.bfloat16)
    ctx = attention(qkv, bias, n_heads)                   # (M, H) bf16
    # out-proj + dropout(identity) + residual + LayerNorm, fused:
    h = dense_res_ln(ctx, p["o_w"], p["o_b"], h, p["ln1_g"], p["ln1_b"])
    inter = dense_act(h, p["i_w"], p["i_b"], activation="gelu",
                      out_dtype=jnp.bfloat16)             # (M, I) bf16
    # down-proj + dropout(identity) + residual + LayerNorm, fused:
    h = dense_res_ln(inter, p["f_w"], p["f_b"], h, p["ln2_g"], p["ln2_b"])
    return h


def roberta_regressor_forward(params, input_ids, attention_mask, *, n_heads):
    B, S = input_ids.shape
    H = params["word_emb"].shape[-1]
    pad_idx = 1

    # RoBERTa position ids: cumsum of non-pad mask, offset by padding_idx.
    m = (input_ids != pad_idx).astype(jnp.int32)
    position_ids = jnp.cumsum(m, axis=1) * m + pad_idx

    # TODO(synk): embedding table gathers have no clean Pallas equivalent on
    # TPU; done with XLA gathers, then LayerNorm runs as a Pallas kernel.
    h = (params["word_emb"][input_ids]
         + params["pos_emb"][position_ids]
         + params["type_emb"][0])                         # (B, S, H) f32
    h = layernorm(h.reshape(B * S, H), params["emb_ln_g"], params["emb_ln_b"])
    # embedding dropout: identity (eval).  Activation stream is bf16 from here.

    # Extended attention mask, kept at (B, 1, S) (no per-head broadcast).
    bias = ((1.0 - attention_mask.astype(jnp.float32)) * -1e9)[:, None, :]

    for layer in params["layers"]:
        h = encoder_layer(h, layer, bias, n_heads)

    cls = h.reshape(B, S, H)[:, 0, :]                     # (B, H) bf16
    out = pooler_regressor(cls, params["pooler_w"], params["pooler_b"],
                           params["reg_w"], params["reg_b"])
    return out


def init_params(key, *, vocab, hidden, n_layers, inter, max_pos):
    def nrm(k, shape, dtype=jnp.float32):
        return (0.02 * jax.random.normal(k, shape, jnp.float32)).astype(dtype)

    keys = jax.random.split(key, 8 + n_layers)
    params = {
        "word_emb": nrm(keys[0], (vocab, hidden)),
        "pos_emb": nrm(keys[1], (max_pos, hidden)),
        "type_emb": nrm(keys[2], (1, hidden)),
        "emb_ln_g": jnp.ones((hidden,), jnp.float32),
        "emb_ln_b": jnp.zeros((hidden,), jnp.float32),
        "pooler_w": nrm(keys[3], (hidden, hidden), jnp.bfloat16),
        "pooler_b": jnp.zeros((hidden,), jnp.float32),
        "reg_w": nrm(keys[4], (hidden, 1), jnp.bfloat16),
        "reg_b": jnp.zeros((1,), jnp.float32),
        "layers": [],
    }
    for li in range(n_layers):
        lk = jax.random.split(keys[8 + li], 6)
        qw = nrm(lk[0], (hidden, hidden), jnp.bfloat16)
        kw = nrm(lk[1], (hidden, hidden), jnp.bfloat16)
        vw = nrm(lk[2], (hidden, hidden), jnp.bfloat16)
        params["layers"].append({
            "qkv_w": jnp.concatenate([qw, kw, vw], axis=1),          # (H, 3H)
            "qkv_b": jnp.zeros((3 * hidden,), jnp.float32),
            "o_w": nrm(lk[3], (hidden, hidden), jnp.bfloat16),
            "o_b": jnp.zeros((hidden,), jnp.float32),
            "ln1_g": jnp.ones((hidden,), jnp.float32),
            "ln1_b": jnp.zeros((hidden,), jnp.float32),
            "i_w": nrm(lk[4], (hidden, inter), jnp.bfloat16),
            "i_b": jnp.zeros((inter,), jnp.float32),
            "f_w": nrm(lk[5], (inter, hidden), jnp.bfloat16),
            "f_b": jnp.zeros((hidden,), jnp.float32),
            "ln2_g": jnp.ones((hidden,), jnp.float32),
            "ln2_b": jnp.zeros((hidden,), jnp.float32),
        })
    return params


def run_config(key, *, B, S, vocab, hidden, n_heads, n_layers, inter):
    kp, kids = jax.random.split(key)
    params = init_params(kp, vocab=vocab, hidden=hidden, n_layers=n_layers,
                         inter=inter, max_pos=S + 8)

    # Token ids avoid RoBERTa padding_idx=1 for real tokens.
    input_ids = jax.random.randint(kids, (B, S), 2, vocab, dtype=jnp.int32)
    attention_mask = jnp.ones((B, S), dtype=jnp.int32).at[1, S - 2:].set(0)
    input_ids = jnp.where(attention_mask == 1, input_ids, 1)

    fwd = jax.jit(functools.partial(roberta_regressor_forward, n_heads=n_heads))
    out = jax.block_until_ready(fwd(params, input_ids, attention_mask))
    assert out.shape == (B, 1) and out.dtype == jnp.float32
    assert bool(jnp.all(jnp.isfinite(out)))
    return out


if __name__ == "__main__":
    key = jax.random.PRNGKey(0)
    k1, k2 = jax.random.split(key)

    # Config A: toy hidden size -> exercises the per-batch full-H attention
    # fallback path.
    run_config(k1, B=2, S=8, vocab=64, hidden=32, n_heads=4, n_layers=2,
               inter=64)

    # Config B: hidden multiple of 128 -> exercises the (batch, head-group)
    # gridded attention path (the optimized layout used at RoBERTa scale).
    run_config(k2, B=2, S=8, vocab=64, hidden=128, n_heads=2, n_layers=1,
               inter=256)

    print("KERNEL_OK")
</pallas_src>

<mosaic_0001>
module attributes {stable_mosaic.version = 11 : i64} {
  func.func @_dense_kernel(%arg0: i32, %arg1: i32, %arg2: i32, %arg3: memref<16x32xbf16, #tpu.memory_space<vmem>>, %arg4: memref<32x96xbf16, #tpu.memory_space<vmem>>, %arg5: memref<1x96xf32, #tpu.memory_space<vmem>>, %arg6: memref<16x96xbf16, #tpu.memory_space<vmem>>, %arg7: memref<16x96xf32, #tpu.memory_space<vmem>>) attributes {dimension_semantics = [#tpu.dimension_semantics<parallel>, #tpu.dimension_semantics<parallel>, #tpu.dimension_semantics<arbitrary>], iteration_bounds = array<i64: 1, 1, 1>, scalar_prefetch = 0 : i64, scratch_operands = 1 : i64, tpu.core_type = #tpu.core_type<tc>, window_params = [{transform_indices = @transform_0, window_bounds = array<i64: 16, 32>}, {transform_indices = @transform_1, window_bounds = array<i64: 32, 96>}, {transform_indices = @transform_2, window_bounds = array<i64: 1, 96>}, {transform_indices = @transform_3, window_bounds = array<i64: 16, 96>}]} {
    %c0_i32 = arith.constant 0 : i32
    %0 = arith.cmpi eq, %arg2, %c0_i32 : i32
    %1 = arith.extui %0 : i1 to i32
    %c0_i32_0 = arith.constant 0 : i32
    %2 = arith.cmpi ne, %1, %c0_i32_0 : i32
    scf.if %2 {
      %cst_10 = arith.constant 0.000000e+00 : f32
      %12 = vector.broadcast %cst_10 : f32 to vector<16x96xf32>
      %c0_11 = arith.constant 0 : index
      %c0_12 = arith.constant 0 : index
      %13 = vector.load %arg7[%c0_11, %c0_12] : memref<16x96xf32, #tpu.memory_space<vmem>>, vector<16x96xf32>
      tpu.vector_store %arg7[%c0_11, %c0_12], %12 {strides = array<i32>} : memref<16x96xf32, #tpu.memory_space<vmem>>, vector<16x96xf32>,
    } else {
    }
    %c0 = arith.constant 0 : index
    %c0_1 = arith.constant 0 : index
    %3 = vector.load %arg7[%c0, %c0_1] : memref<16x96xf32, #tpu.memory_space<vmem>>, vector<16x96xf32>
    %c0_2 = arith.constant 0 : index
    %c0_3 = arith.constant 0 : index
    %4 = vector.load %arg3[%c0_2, %c0_3] : memref<16x32xbf16, #tpu.memory_space<vmem>>, vector<16x32xbf16>
    %c0_4 = arith.constant 0 : index
    %c0_5 = arith.constant 0 : index
    %5 = vector.load %arg4[%c0_4, %c0_5] : memref<32x96xbf16, #tpu.memory_space<vmem>>, vector<32x96xbf16>
    %cst = arith.constant dense<0.000000e+00> : vector<16x96xf32>
    %6 = tpu.matmul %4, %5, %cst {dimension_numbers = #tpu.dot_dimension_numbers<[1], [0], [0], [1], [0, 0, 1, 1], [], []>} : vector<16x32xbf16>, vector<32x96xbf16>, vector<16x96xf32> -> vector<16x96xf32>
    %7 = arith.addf %3, %6 : vector<16x96xf32>
    %c0_6 = arith.constant 0 : index
    %c0_7 = arith.constant 0 : index
    %8 = vector.load %arg7[%c0_6, %c0_7] : memref<16x96xf32, #tpu.memory_space<vmem>>, vector<16x96xf32>
    tpu.vector_store %arg7[%c0_6, %c0_7], %7 {strides = array<i32>} : memref<16x96xf32, #tpu.memory_space<vmem>>, vector<16x96xf32>,
    %c0_i32_8 = arith.constant 0 : i32
    %9 = arith.cmpi eq, %arg2, %c0_i32_8 : i32
    %10 = arith.extui %9 : i1 to i32
    %c0_i32_9 = arith.constant 0 : i32
    %11 = arith.cmpi ne, %10, %c0_i32_9 : i32
    scf.if %11 {
      %c0_10 = arith.constant 0 : index
      %c0_11 = arith.constant 0 : index
      %12 = vector.load %arg7[%c0_10, %c0_11] : memref<16x96xf32, #tpu.memory_space<vmem>>, vector<16x96xf32>
      %c0_12 = arith.constant 0 : index
      %c0_13 = arith.constant 0 : index
      %13 = vector.load %arg5[%c0_12, %c0_13] : memref<1x96xf32, #tpu.memory_space<vmem>>, vector<1x96xf32>
      %14 = vector.broadcast %13 : vector<1x96xf32> to vector<16x96xf32>
      %15 = arith.addf %12, %14 : vector<16x96xf32>
      %16 = arith.truncf %15 : vector<16x96xf32> to vector<16x96xbf16>
      %c0_14 = arith.constant 0 : index
      %c0_15 = arith.constant 0 : index
      %17 = vector.load %arg6[%c0_14, %c0_15] : memref<16x96xbf16, #tpu.memory_space<vmem>>, vector<16x96xbf16>
      tpu.vector_store %arg6[%c0_14, %c0_15], %16 {strides = array<i32>} : memref<16x96xbf16, #tpu.memory_space<vmem>>, vector<16x96xbf16>,
    } else {
    }
    return
  }
  func.func @transform_0(%arg0: i32, %arg1: i32, %arg2: i32) -> (i32, i32) {
    %c0_i32 = arith.constant 0 : i32
    return %arg0, %arg2 : i32, i32
  }
  func.func @transform_1(%arg0: i32, %arg1: i32, %arg2: i32) -> (i32, i32) {
    %c0_i32 = arith.constant 0 : i32
    return %arg2, %arg1 : i32, i32
  }
  func.func @transform_2(%arg0: i32, %arg1: i32, %arg2: i32) -> (i32, i32) {
    %c0_i32 = arith.constant 0 : i32
    %c0_i32_0 = arith.constant 0 : i32
    return %c0_i32, %arg1 : i32, i32
  }
  func.func @transform_3(%arg0: i32, %arg1: i32, %arg2: i32) -> (i32, i32) {
    %c0_i32 = arith.constant 0 : i32
    return %arg0, %arg1 : i32, i32
  }
}

module attributes {stable_mosaic.version = 11 : i64} {
  func.func @_layernorm_kernel(%arg0: i32, %arg1: memref<16x32xf32, #tpu.memory_space<vmem>>, %arg2: memref<1x32xf32, #tpu.memory_space<vmem>>, %arg3: memref<1x32xf32, #tpu.memory_space<vmem>>, %arg4: memref<16x32xbf16, #tpu.memory_space<vmem>>) attributes {dimension_semantics = [#tpu.dimension_semantics<parallel>], iteration_bounds = array<i64: 1>, scalar_prefetch = 0 : i64, scratch_operands = 0 : i64, tpu.core_type = #tpu.core_type<tc>, window_params = [{transform_indices = @transform_0, window_bounds = array<i64: 16, 32>}, {pipeline_mode = #tpu.pipeline_mode<synchronous>, transform_indices = @transform_1, window_bounds = array<i64: 1, 32>}, {pipeline_mode = #tpu.pipeline_mode<synchronous>, transform_indices = @transform_2, window_bounds = array<i64: 1, 32>}, {transform_indices = @transform_3, window_bounds = array<i64: 16, 32>}]} {
    %c0 = arith.constant 0 : index
    %c0_0 = arith.constant 0 : index
    %0 = vector.load %arg1[%c0, %c0_0] : memref<16x32xf32, #tpu.memory_space<vmem>>, vector<16x32xf32>
    %cst = arith.constant dense<0.000000e+00> : vector<16xf32>
    %1 = vector.multi_reduction <add>, %0, %cst [1] : vector<16x32xf32> to vector<16xf32>
    %2 = vector.shape_cast %1 : vector<16xf32> to vector<16x1xf32>
    %cst_1 = arith.constant 3.200000e+01 : f32
    %3 = vector.broadcast %cst_1 : f32 to vector<16x1xf32>
    %4 = arith.divf %2, %3 : vector<16x1xf32>
    %5 = vector.broadcast %4 : vector<16x1xf32> to vector<16x32xf32>
    %6 = arith.subf %0, %5 : vector<16x32xf32>
    %7 = arith.mulf %6, %6 : vector<16x32xf32>
    %cst_2 = arith.constant dense<0.000000e+00> : vector<16xf32>
    %8 = vector.multi_reduction <add>, %7, %cst_2 [1] : vector<16x32xf32> to vector<16xf32>
    %9 = vector.shape_cast %8 : vector<16xf32> to vector<16x1xf32>
    %cst_3 = arith.constant 3.200000e+01 : f32
    %10 = vector.broadcast %cst_3 : f32 to vector<16x1xf32>
    %11 = arith.divf %9, %10 : vector<16x1xf32>
    %cst_4 = arith.constant 9.99999974E-6 : f32
    %12 = vector.broadcast %cst_4 : f32 to vector<16x1xf32>
    %13 = arith.addf %11, %12 : vector<16x1xf32>
    %14 = math.rsqrt %13 : vector<16x1xf32>
    %15 = vector.broadcast %14 : vector<16x1xf32> to vector<16x32xf32>
    %16 = arith.mulf %6, %15 : vector<16x32xf32>
    %c0_5 = arith.constant 0 : index
    %c0_6 = arith.constant 0 : index
    %17 = vector.load %arg2[%c0_5, %c0_6] : memref<1x32xf32, #tpu.memory_space<vmem>>, vector<1x32xf32>
    %18 = vector.broadcast %17 : vector<1x32xf32> to vector<16x32xf32>
    %19 = arith.mulf %16, %18 : vector<16x32xf32>
    %c0_7 = arith.constant 0 : index
    %c0_8 = arith.constant 0 : index
    %20 = vector.load %arg3[%c0_7, %c0_8] : memref<1x32xf32, #tpu.memory_space<vmem>>, vector<1x32xf32>
    %21 = vector.broadcast %20 : vector<1x32xf32> to vector<16x32xf32>
    %22 = arith.addf %19, %21 : vector<16x32xf32>
    %23 = arith.truncf %22 : vector<16x32xf32> to vector<16x32xbf16>
    %c0_9 = arith.constant 0 : index
    %c0_10 = arith.constant 0 : index
    %24 = vector.load %arg4[%c0_9, %c0_10] : memref<16x32xbf16, #tpu.memory_space<vmem>>, vector<16x32xbf16>
    tpu.vector_store %arg4[%c0_9, %c0_10], %23 {strides = array<i32>} : memref<16x32xbf16, #tpu.memory_space<vmem>>, vector<16x32xbf16>,
    return
  }
  func.func @transform_0(%arg0: i32) -> (i32, i32) {
    %c0_i32 = arith.constant 0 : i32
    %c0_i32_0 = arith.constant 0 : i32
    return %arg0, %c0_i32 : i32, i32
  }
  func.func @transform_1(%arg0: i32) -> (i32, i32) {
    %c0_i32 = arith.constant 0 : i32
    %c0_i32_0 = arith.constant 0 : i32
    %c0_i32_1 = arith.constant 0 : i32
    return %c0_i32, %c0_i32_0 : i32, i32
  }
  func.func @transform_2(%arg0: i32) -> (i32, i32) {
    %c0_i32 = arith.constant 0 : i32
    %c0_i32_0 = arith.constant 0 : i32
    %c0_i32_1 = arith.constant 0 : i32
    return %c0_i32, %c0_i32_0 : i32, i32
  }
  func.func @transform_3(%arg0: i32) -> (i32, i32) {
    %c0_i32 = arith.constant 0 : i32
    %c0_i32_0 = arith.constant 0 : i32
    return %arg0, %c0_i32 : i32, i32
  }
}

module attributes {stable_mosaic.version = 11 : i64} {
  func.func @_attn_full_kernel(%arg0: i32, %arg1: memref<8x96xbf16, #tpu.memory_space<vmem>>, %arg2: memref<1x1x8xf32, #tpu.memory_space<vmem>>, %arg3: memref<8x32xbf16, #tpu.memory_space<vmem>>) attributes {dimension_semantics = [#tpu.dimension_semantics<parallel>], iteration_bounds = array<i64: 2>, scalar_prefetch = 0 : i64, scratch_operands = 0 : i64, tpu.core_type = #tpu.core_type<tc>, window_params = [{transform_indices = @transform_0, window_bounds = array<i64: 8, 96>}, {transform_indices = @transform_1, window_bounds = array<i64: 1, 1, 8>}, {transform_indices = @transform_2, window_bounds = array<i64: 8, 32>}]} {
    %c0 = arith.constant 0 : index
    %c0_0 = arith.constant 0 : index
    %0 = vector.load %arg1[%c0, %c0_0] : memref<8x96xbf16, #tpu.memory_space<vmem>>, vector<8x32xbf16>
    %c0_1 = arith.constant 0 : index
    %c32 = arith.constant 32 : index
    %1 = vector.load %arg1[%c0_1, %c32] : memref<8x96xbf16, #tpu.memory_space<vmem>>, vector<8x32xbf16>
    %c0_2 = arith.constant 0 : index
    %c64 = arith.constant 64 : index
    %2 = vector.load %arg1[%c0_2, %c64] : memref<8x96xbf16, #tpu.memory_space<vmem>>, vector<8x32xbf16>
    %c0_3 = arith.constant 0 : index
    %c0_4 = arith.constant 0 : index
    %c0_5 = arith.constant 0 : index
    %3 = vector.load %arg2[%c0_3, %c0_4, %c0_5] : memref<1x1x8xf32, #tpu.memory_space<vmem>>, vector<1x1x8xf32>
    %4 = vector.shape_cast %3 : vector<1x1x8xf32> to vector<1x8xf32>
    %5 = vector.extract_strided_slice %0 {offsets = [0, 0], sizes = [8, 8], strides = [1, 1]} : vector<8x32xbf16> to vector<8x8xbf16>
    %6 = vector.extract_strided_slice %1 {offsets = [0, 0], sizes = [8, 8], strides = [1, 1]} : vector<8x32xbf16> to vector<8x8xbf16>
    %7 = vector.extract_strided_slice %2 {offsets = [0, 0], sizes = [8, 8], strides = [1, 1]} : vector<8x32xbf16> to vector<8x8xbf16>
    %8 = arith.extf %5 : vector<8x8xbf16> to vector<8x8xf32>
    %cst = arith.constant 0.353553385 : f32
    %9 = vector.broadcast %cst : f32 to vector<8x8xf32>
    %10 = arith.mulf %8, %9 : vector<8x8xf32>
    %11 = arith.truncf %10 : vector<8x8xf32> to vector<8x8xbf16>
    %cst_6 = arith.constant dense<0.000000e+00> : vector<8x8xf32>
    %12 = tpu.matmul %11, %6, %cst_6 {dimension_numbers = #tpu.dot_dimension_numbers<[1], [1], [0], [0], [0, 0, 1, 0], [], []>} : vector<8x8xbf16>, vector<8x8xbf16>, vector<8x8xf32> -> vector<8x8xf32>
    %13 = vector.broadcast %4 : vector<1x8xf32> to vector<8x8xf32>
    %14 = arith.addf %12, %13 : vector<8x8xf32>
    %cst_7 = arith.constant dense<0xFF800000> : vector<8xf32>
    %15 = vector.multi_reduction <maximumf>, %14, %cst_7 [1] : vector<8x8xf32> to vector<8xf32>
    %16 = vector.shape_cast %15 : vector<8xf32> to vector<8x1xf32>
    %17 = vector.broadcast %16 : vector<8x1xf32> to vector<8x8xf32>
    %18 = arith.subf %14, %17 : vector<8x8xf32>
    %19 = math.exp %18 : vector<8x8xf32>
    %cst_8 = arith.constant dense<0.000000e+00> : vector<8xf32>
    %20 = vector.multi_reduction <add>, %19, %cst_8 [1] : vector<8x8xf32> to vector<8xf32>
    %21 = vector.shape_cast %20 : vector<8xf32> to vector<8x1xf32>
    %22 = tpu.reciprocal %21 {approx = true} : vector<8x1xf32> -> vector<8x1xf32>
    %23 = vector.broadcast %22 : vector<8x1xf32> to vector<8x8xf32>
    %24 = arith.mulf %19, %23 : vector<8x8xf32>
    %25 = arith.truncf %24 : vector<8x8xf32> to vector<8x8xbf16>
    %cst_9 = arith.constant dense<0.000000e+00> : vector<8x8xf32>
    %26 = tpu.matmul %25, %7, %cst_9 {dimension_numbers = #tpu.dot_dimension_numbers<[1], [0], [0], [1], [0, 0, 1, 1], [], []>} : vector<8x8xbf16>, vector<8x8xbf16>, vector<8x8xf32> -> vector<8x8xf32>
    %27 = arith.truncf %26 : vector<8x8xf32> to vector<8x8xbf16>
    %c0_10 = arith.constant 0 : index
    %c0_11 = arith.constant 0 : index
    %28 = vector.load %arg3[%c0_10, %c0_11] : memref<8x32xbf16, #tpu.memory_space<vmem>>, vector<8x8xbf16>
    tpu.vector_store %arg3[%c0_10, %c0_11], %27 {strides = array<i32>} : memref<8x32xbf16, #tpu.memory_space<vmem>>, vector<8x8xbf16>,
    %29 = vector.extract_strided_slice %0 {offsets = [0, 8], sizes = [8, 8], strides = [1, 1]} : vector<8x32xbf16> to vector<8x8xbf16>
    %30 = vector.extract_strided_slice %1 {offsets = [0, 8], sizes = [8, 8], strides = [1, 1]} : vector<8x32xbf16> to vector<8x8xbf16>
    %31 = vector.extract_strided_slice %2 {offsets = [0, 8], sizes = [8, 8], strides = [1, 1]} : vector<8x32xbf16> to vector<8x8xbf16>
    %32 = arith.extf %29 : vector<8x8xbf16> to vector<8x8xf32>
    %cst_12 = arith.constant 0.353553385 : f32
    %33 = vector.broadcast %cst_12 : f32 to vector<8x8xf32>
    %34 = arith.mulf %32, %33 : vector<8x8xf32>
    %35 = arith.truncf %34 : vector<8x8xf32> to vector<8x8xbf16>
    %cst_13 = arith.constant dense<0.000000e+00> : vector<8x8xf32>
    %36 = tpu.matmul %35, %30, %cst_13 {dimension_numbers = #tpu.dot_dimension_numbers<[1], [1], [0], [0], [0, 0, 1, 0], [], []>} : vector<8x8xbf16>, vector<8x8xbf16>, vector<8x8xf32> -> vector<8x8xf32>
    %37 = vector.broadcast %4 : vector<1x8xf32> to vector<8x8xf32>
    %38 = arith.addf %36, %37 : vector<8x8xf32>
    %cst_14 = arith.constant dense<0xFF800000> : vector<8xf32>
    %39 = vector.multi_reduction <maximumf>, %38, %cst_14 [1] : vector<8x8xf32> to vector<8xf32>
    %40 = vector.shape_cast %39 : vector<8xf32> to vector<8x1xf32>
    %41 = vector.broadcast %40 : vector<8x1xf32> to vector<8x8xf32>
    %42 = arith.subf %38, %41 : vector<8x8xf32>
    %43 = math.exp %42 : vector<8x8xf32>
    %cst_15 = arith.constant dense<0.000000e+00> : vector<8xf32>
    %44 = vector.multi_reduction <add>, %43, %cst_15 [1] : vector<8x8xf32> to vector<8xf32>
    %45 = vector.shape_cast %44 : vector<8xf32> to vector<8x1xf32>
    %46 = tpu.reciprocal %45 {approx = true} : vector<8x1xf32> -> vector<8x1xf32>
    %47 = vector.broadcast %46 : vector<8x1xf32> to vector<8x8xf32>
    %48 = arith.mulf %43, %47 : vector<8x8xf32>
    %49 = arith.truncf %48 : vector<8x8xf32> to vector<8x8xbf16>
    %cst_16 = arith.constant dense<0.000000e+00> : vector<8x8xf32>
    %50 = tpu.matmul %49, %31, %cst_16 {dimension_numbers = #tpu.dot_dimension_numbers<[1], [0], [0], [1], [0, 0, 1, 1], [], []>} : vector<8x8xbf16>, vector<8x8xbf16>, vector<8x8xf32> -> vector<8x8xf32>
    %51 = arith.truncf %50 : vector<8x8xf32> to vector<8x8xbf16>
    %c0_17 = arith.constant 0 : index
    %c8 = arith.constant 8 : index
    %52 = vector.load %arg3[%c0_17, %c8] : memref<8x32xbf16, #tpu.memory_space<vmem>>, vector<8x8xbf16>
    tpu.vector_store %arg3[%c0_17, %c8], %51 {strides = array<i32>} : memref<8x32xbf16, #tpu.memory_space<vmem>>, vector<8x8xbf16>,
    %53 = vector.extract_strided_slice %0 {offsets = [0, 16], sizes = [8, 8], strides = [1, 1]} : vector<8x32xbf16> to vector<8x8xbf16>
    %54 = vector.extract_strided_slice %1 {offsets = [0, 16], sizes = [8, 8], strides = [1, 1]} : vector<8x32xbf16> to vector<8x8xbf16>
    %55 = vector.extract_strided_slice %2 {offsets = [0, 16], sizes = [8, 8], strides = [1, 1]} : vector<8x32xbf16> to vector<8x8xbf16>
    %56 = arith.extf %53 : vector<8x8xbf16> to vector<8x8xf32>
    %cst_18 = arith.constant 0.353553385 : f32
    %57 = vector.broadcast %cst_18 : f32 to vector<8x8xf32>
    %58 = arith.mulf %56, %57 : vector<8x8xf32>
    %59 = arith.truncf %58 : vector<8x8xf32> to vector<8x8xbf16>
    %cst_19 = arith.constant dense<0.000000e+00> : vector<8x8xf32>
    %60 = tpu.matmul %59, %54, %cst_19 {dimension_numbers = #tpu.dot_dimension_numbers<[1], [1], [0], [0], [0, 0, 1, 0], [], []>} : vector<8x8xbf16>, vector<8x8xbf16>, vector<8x8xf32> -> vector<8x8xf32>
    %61 = vector.broadcast %4 : vector<1x8xf32> to vector<8x8xf32>
    %62 = arith.addf %60, %61 : vector<8x8xf32>
    %cst_20 = arith.constant dense<0xFF800000> : vector<8xf32>
    %63 = vector.multi_reduction <maximumf>, %62, %cst_20 [1] : vector<8x8xf32> to vector<8xf32>
    %64 = vector.shape_cast %63 : vector<8xf32> to vector<8x1xf32>
    %65 = vector.broadcast %64 : vector<8x1xf32> to vector<8x8xf32>
    %66 = arith.subf %62, %65 : vector<8x8xf32>
    %67 = math.exp %66 : vector<8x8xf32>
    %cst_21 = arith.constant dense<0.000000e+00> : vector<8xf32>
    %68 = vector.multi_reduction <add>, %67, %cst_21 [1] : vector<8x8xf32> to vector<8xf32>
    %69 = vector.shape_cast %68 : vector<8xf32> to vector<8x1xf32>
    %70 = tpu.reciprocal %69 {approx = true} : vector<8x1xf32> -> vector<8x1xf32>
    %71 = vector.broadcast %70 : vector<8x1xf32> to vector<8x8xf32>
    %72 = arith.mulf %67, %71 : vector<8x8xf32>
    %73 = arith.truncf %72 : vector<8x8xf32> to vector<8x8xbf16>
    %cst_22 = arith.constant dense<0.000000e+00> : vector<8x8xf32>
    %74 = tpu.matmul %73, %55, %cst_22 {dimension_numbers = #tpu.dot_dimension_numbers<[1], [0], [0], [1], [0, 0, 1, 1], [], []>} : vector<8x8xbf16>, vector<8x8xbf16>, vector<8x8xf32> -> vector<8x8xf32>
    %75 = arith.truncf %74 : vector<8x8xf32> to vector<8x8xbf16>
    %c0_23 = arith.constant 0 : index
    %c16 = arith.constant 16 : index
    %76 = vector.load %arg3[%c0_23, %c16] : memref<8x32xbf16, #tpu.memory_space<vmem>>, vector<8x8xbf16>
    tpu.vector_store %arg3[%c0_23, %c16], %75 {strides = array<i32>} : memref<8x32xbf16, #tpu.memory_space<vmem>>, vector<8x8xbf16>,
    %77 = vector.extract_strided_slice %0 {offsets = [0, 24], sizes = [8, 8], strides = [1, 1]} : vector<8x32xbf16> to vector<8x8xbf16>
    %78 = vector.extract_strided_slice %1 {offsets = [0, 24], sizes = [8, 8], strides = [1, 1]} : vector<8x32xbf16> to vector<8x8xbf16>
    %79 = vector.extract_strided_slice %2 {offsets = [0, 24], sizes = [8, 8], strides = [1, 1]} : vector<8x32xbf16> to vector<8x8xbf16>
    %80 = arith.extf %77 : vector<8x8xbf16> to vector<8x8xf32>
    %cst_24 = arith.constant 0.353553385 : f32
    %81 = vector.broadcast %cst_24 : f32 to vector<8x8xf32>
    %82 = arith.mulf %80, %81 : vector<8x8xf32>
    %83 = arith.truncf %82 : vector<8x8xf32> to vector<8x8xbf16>
    %cst_25 = arith.constant dense<0.000000e+00> : vector<8x8xf32>
    %84 = tpu.matmul %83, %78, %cst_25 {dimension_numbers = #tpu.dot_dimension_numbers<[1], [1], [0], [0], [0, 0, 1, 0], [], []>} : vector<8x8xbf16>, vector<8x8xbf16>, vector<8x8xf32> -> vector<8x8xf32>
    %85 = vector.broadcast %4 : vector<1x8xf32> to vector<8x8xf32>
    %86 = arith.addf %84, %85 : vector<8x8xf32>
    %cst_26 = arith.constant dense<0xFF800000> : vector<8xf32>
    %87 = vector.multi_reduction <maximumf>, %86, %cst_26 [1] : vector<8x8xf32> to vector<8xf32>
    %88 = vector.shape_cast %87 : vector<8xf32> to vector<8x1xf32>
    %89 = vector.broadcast %88 : vector<8x1xf32> to vector<8x8xf32>
    %90 = arith.subf %86, %89 : vector<8x8xf32>
    %91 = math.exp %90 : vector<8x8xf32>
    %cst_27 = arith.constant dense<0.000000e+00> : vector<8xf32>
    %92 = vector.multi_reduction <add>, %91, %cst_27 [1] : vector<8x8xf32> to vector<8xf32>
    %93 = vector.shape_cast %92 : vector<8xf32> to vector<8x1xf32>
    %94 = tpu.reciprocal %93 {approx = true} : vector<8x1xf32> -> vector<8x1xf32>
    %95 = vector.broadcast %94 : vector<8x1xf32> to vector<8x8xf32>
    %96 = arith.mulf %91, %95 : vector<8x8xf32>
    %97 = arith.truncf %96 : vector<8x8xf32> to vector<8x8xbf16>
    %cst_28 = arith.constant dense<0.000000e+00> : vector<8x8xf32>
    %98 = tpu.matmul %97, %79, %cst_28 {dimension_numbers = #tpu.dot_dimension_numbers<[1], [0], [0], [1], [0, 0, 1, 1], [], []>} : vector<8x8xbf16>, vector<8x8xbf16>, vector<8x8xf32> -> vector<8x8xf32>
    %99 = arith.truncf %98 : vector<8x8xf32> to vector<8x8xbf16>
    %c0_29 = arith.constant 0 : index
    %c24 = arith.constant 24 : index
    %100 = vector.load %arg3[%c0_29, %c24] : memref<8x32xbf16, #tpu.memory_space<vmem>>, vector<8x8xbf16>
    tpu.vector_store %arg3[%c0_29, %c24], %99 {strides = array<i32>} : memref<8x32xbf16, #tpu.memory_space<vmem>>, vector<8x8xbf16>,
    return
  }
  func.func @transform_0(%arg0: i32) -> (i32, i32) {
    %c0_i32 = arith.constant 0 : i32
    %c0_i32_0 = arith.constant 0 : i32
    return %arg0, %c0_i32 : i32, i32
  }
  func.func @transform_1(%arg0: i32) -> (i32, i32, i32) {
    %c0_i32 = arith.constant 0 : i32
    %c0_i32_0 = arith.constant 0 : i32
    %c0_i32_1 = arith.constant 0 : i32
    return %arg0, %c0_i32, %c0_i32_0 : i32, i32, i32
  }
  func.func @transform_2(%arg0: i32) -> (i32, i32) {
    %c0_i32 = arith.constant 0 : i32
    %c0_i32_0 = arith.constant 0 : i32
    return %arg0, %c0_i32 : i32, i32
  }
}

module attributes {stable_mosaic.version = 11 : i64} {
  func.func @_dense_res_ln_kernel(%arg0: i32, %arg1: i32, %arg2: memref<16x32xbf16, #tpu.memory_space<vmem>>, %arg3: memref<32x32xbf16, #tpu.memory_space<vmem>>, %arg4: memref<1x32xf32, #tpu.memory_space<vmem>>, %arg5: memref<16x32xbf16, #tpu.memory_space<vmem>>, %arg6: memref<1x32xf32, #tpu.memory_space<vmem>>, %arg7: memref<1x32xf32, #tpu.memory_space<vmem>>, %arg8: memref<16x32xbf16, #tpu.memory_space<vmem>>, %arg9: memref<16x32xf32, #tpu.memory_space<vmem>>) attributes {dimension_semantics = [#tpu.dimension_semantics<parallel>, #tpu.dimension_semantics<arbitrary>], iteration_bounds = array<i64: 1, 1>, scalar_prefetch = 0 : i64, scratch_operands = 1 : i64, tpu.core_type = #tpu.core_type<tc>, window_params = [{transform_indices = @transform_0, window_bounds = array<i64: 16, 32>}, {transform_indices = @transform_1, window_bounds = array<i64: 32, 32>}, {pipeline_mode = #tpu.pipeline_mode<synchronous>, transform_indices = @transform_2, window_bounds = array<i64: 1, 32>}, {transform_indices = @transform_3, window_bounds = array<i64: 16, 32>}, {pipeline_mode = #tpu.pipeline_mode<synchronous>, transform_indices = @transform_4, window_bounds = array<i64: 1, 32>}, {pipeline_mode = #tpu.pipeline_mode<synchronous>, transform_indices = @transform_5, window_bounds = array<i64: 1, 32>}, {transform_indices = @transform_6, window_bounds = array<i64: 16, 32>}]} {
    %c0_i32 = arith.constant 0 : i32
    %0 = arith.cmpi eq, %arg1, %c0_i32 : i32
    %1 = arith.extui %0 : i1 to i32
    %c0_i32_0 = arith.constant 0 : i32
    %2 = arith.cmpi ne, %1, %c0_i32_0 : i32
    scf.if %2 {
      %cst_10 = arith.constant 0.000000e+00 : f32
      %12 = vector.broadcast %cst_10 : f32 to vector<16x32xf32>
      %c0_11 = arith.constant 0 : index
      %c0_12 = arith.constant 0 : index
      %13 = vector.load %arg9[%c0_11, %c0_12] : memref<16x32xf32, #tpu.memory_space<vmem>>, vector<16x32xf32>
      tpu.vector_store %arg9[%c0_11, %c0_12], %12 {strides = array<i32>} : memref<16x32xf32, #tpu.memory_space<vmem>>, vector<16x32xf32>,
    } else {
    }
    %c0 = arith.constant 0 : index
    %c0_1 = arith.constant 0 : index
    %3 = vector.load %arg9[%c0, %c0_1] : memref<16x32xf32, #tpu.memory_space<vmem>>, vector<16x32xf32>
    %c0_2 = arith.constant 0 : index
    %c0_3 = arith.constant 0 : index
    %4 = vector.load %arg2[%c0_2, %c0_3] : memref<16x32xbf16, #tpu.memory_space<vmem>>, vector<16x32xbf16>
    %c0_4 = arith.constant 0 : index
    %c0_5 = arith.constant 0 : index
    %5 = vector.load %arg3[%c0_4, %c0_5] : memref<32x32xbf16, #tpu.memory_space<vmem>>, vector<32x32xbf16>
    %cst = arith.constant dense<0.000000e+00> : vector<16x32xf32>
    %6 = tpu.matmul %4, %5, %cst {dimension_numbers = #tpu.dot_dimension_numbers<[1], [0], [0], [1], [0, 0, 1, 1], [], []>} : vector<16x32xbf16>, vector<32x32xbf16>, vector<16x32xf32> -> vector<16x32xf32>
    %7 = arith.addf %3, %6 : vector<16x32xf32>
    %c0_6 = arith.constant 0 : index
    %c0_7 = arith.constant 0 : index
    %8 = vector.load %arg9[%c0_6, %c0_7] : memref<16x32xf32, #tpu.memory_space<vmem>>, vector<16x32xf32>
    tpu.vector_store %arg9[%c0_6, %c0_7], %7 {strides = array<i32>} : memref<16x32xf32, #tpu.memory_space<vmem>>, vector<16x32xf32>,
    %c0_i32_8 = arith.constant 0 : i32
    %9 = arith.cmpi eq, %arg1, %c0_i32_8 : i32
    %10 = arith.extui %9 : i1 to i32
    %c0_i32_9 = arith.constant 0 : i32
    %11 = arith.cmpi ne, %10, %c0_i32_9 : i32
    scf.if %11 {
      %c0_10 = arith.constant 0 : index
      %c0_11 = arith.constant 0 : index
      %12 = vector.load %arg9[%c0_10, %c0_11] : memref<16x32xf32, #tpu.memory_space<vmem>>, vector<16x32xf32>
      %c0_12 = arith.constant 0 : index
      %c0_13 = arith.constant 0 : index
      %13 = vector.load %arg4[%c0_12, %c0_13] : memref<1x32xf32, #tpu.memory_space<vmem>>, vector<1x32xf32>
      %14 = vector.broadcast %13 : vector<1x32xf32> to vector<16x32xf32>
      %15 = arith.addf %12, %14 : vector<16x32xf32>
      %c0_14 = arith.constant 0 : index
      %c0_15 = arith.constant 0 : index
      %16 = vector.load %arg5[%c0_14, %c0_15] : memref<16x32xbf16, #tpu.memory_space<vmem>>, vector<16x32xbf16>
      %17 = arith.extf %16 : vector<16x32xbf16> to vector<16x32xf32>
      %18 = arith.addf %15, %17 : vector<16x32xf32>
      %cst_16 = arith.constant dense<0.000000e+00> : vector<16xf32>
      %19 = vector.multi_reduction <add>, %18, %cst_16 [1] : vector<16x32xf32> to vector<16xf32>
      %20 = vector.shape_cast %19 : vector<16xf32> to vector<16x1xf32>
      %cst_17 = arith.constant 3.200000e+01 : f32
      %21 = vector.broadcast %cst_17 : f32 to vector<16x1xf32>
      %22 = arith.divf %20, %21 : vector<16x1xf32>
      %23 = vector.broadcast %22 : vector<16x1xf32> to vector<16x32xf32>
      %24 = arith.subf %18, %23 : vector<16x32xf32>
      %25 = arith.mulf %24, %24 : vector<16x32xf32>
      %cst_18 = arith.constant dense<0.000000e+00> : vector<16xf32>
      %26 = vector.multi_reduction <add>, %25, %cst_18 [1] : vector<16x32xf32> to vector<16xf32>
      %27 = vector.shape_cast %26 : vector<16xf32> to vector<16x1xf32>
      %cst_19 = arith.constant 3.200000e+01 : f32
      %28 = vector.broadcast %cst_19 : f32 to vector<16x1xf32>
      %29 = arith.divf %27, %28 : vector<16x1xf32>
      %cst_20 = arith.constant 9.99999974E-6 : f32
      %30 = vector.broadcast %cst_20 : f32 to vector<16x1xf32>
      %31 = arith.addf %29, %30 : vector<16x1xf32>
      %32 = math.rsqrt %31 : vector<16x1xf32>
      %33 = vector.broadcast %32 : vector<16x1xf32> to vector<16x32xf32>
      %34 = arith.mulf %24, %33 : vector<16x32xf32>
      %c0_21 = arith.constant 0 : index
      %c0_22 = arith.constant 0 : index
      %35 = vector.load %arg6[%c0_21, %c0_22] : memref<1x32xf32, #tpu.memory_space<vmem>>, vector<1x32xf32>
      %36 = vector.broadcast %35 : vector<1x32xf32> to vector<16x32xf32>
      %37 = arith.mulf %34, %36 : vector<16x32xf32>
      %c0_23 = arith.constant 0 : index
      %c0_24 = arith.constant 0 : index
      %38 = vector.load %arg7[%c0_23, %c0_24] : memref<1x32xf32, #tpu.memory_space<vmem>>, vector<1x32xf32>
      %39 = vector.broadcast %38 : vector<1x32xf32> to vector<16x32xf32>
      %40 = arith.addf %37, %39 : vector<16x32xf32>
      %41 = arith.truncf %40 : vector<16x32xf32> to vector<16x32xbf16>
      %c0_25 = arith.constant 0 : index
      %c0_26 = arith.constant 0 : index
      %42 = vector.load %arg8[%c0_25, %c0_26] : memref<16x32xbf16, #tpu.memory_space<vmem>>, vector<16x32xbf16>
      tpu.vector_store %arg8[%c0_25, %c0_26], %41 {strides = array<i32>} : memref<16x32xbf16, #tpu.memory_space<vmem>>, vector<16x32xbf16>,
    } else {
    }
    return
  }
  func.func @transform_0(%arg0: i32, %arg1: i32) -> (i32, i32) {
    %c0_i32 = arith.constant 0 : i32
    return %arg0, %arg1 : i32, i32
  }
  func.func @transform_1(%arg0: i32, %arg1: i32) -> (i32, i32) {
    %c0_i32 = arith.constant 0 : i32
    %c0_i32_0 = arith.constant 0 : i32
    return %arg1, %c0_i32 : i32, i32
  }
  func.func @transform_2(%arg0: i32, %arg1: i32) -> (i32, i32) {
    %c0_i32 = arith.constant 0 : i32
    %c0_i32_0 = arith.constant 0 : i32
    %c0_i32_1 = arith.constant 0 : i32
    return %c0_i32, %c0_i32_0 : i32, i32
  }
  func.func @transform_3(%arg0: i32, %arg1: i32) -> (i32, i32) {
    %c0_i32 = arith.constant 0 : i32
    %c0_i32_0 = arith.constant 0 : i32
    return %arg0, %c0_i32 : i32, i32
  }
  func.func @transform_4(%arg0: i32, %arg1: i32) -> (i32, i32) {
    %c0_i32 = arith.constant 0 : i32
    %c0_i32_0 = arith.constant 0 : i32
    %c0_i32_1 = arith.constant 0 : i32
    return %c0_i32, %c0_i32_0 : i32, i32
  }
  func.func @transform_5(%arg0: i32, %arg1: i32) -> (i32, i32) {
    %c0_i32 = arith.constant 0 : i32
    %c0_i32_0 = arith.constant 0 : i32
    %c0_i32_1 = arith.constant 0 : i32
    return %c0_i32, %c0_i32_0 : i32, i32
  }
  func.func @transform_6(%arg0: i32, %arg1: i32) -> (i32, i32) {
    %c0_i32 = arith.constant 0 : i32
    %c0_i32_0 = arith.constant 0 : i32
    return %arg0, %c0_i32 : i32, i32
  }
}

module attributes {stable_mosaic.version = 11 : i64} {
  func.func @_dense_kernel(%arg0: i32, %arg1: i32, %arg2: i32, %arg3: memref<16x32xbf16, #tpu.memory_space<vmem>>, %arg4: memref<32x64xbf16, #tpu.memory_space<vmem>>, %arg5: memref<1x64xf32, #tpu.memory_space<vmem>>, %arg6: memref<16x64xbf16, #tpu.memory_space<vmem>>, %arg7: memref<16x64xf32, #tpu.memory_space<vmem>>) attributes {dimension_semantics = [#tpu.dimension_semantics<parallel>, #tpu.dimension_semantics<parallel>, #tpu.dimension_semantics<arbitrary>], iteration_bounds = array<i64: 1, 1, 1>, scalar_prefetch = 0 : i64, scratch_operands = 1 : i64, tpu.core_type = #tpu.core_type<tc>, window_params = [{transform_indices = @transform_0, window_bounds = array<i64: 16, 32>}, {transform_indices = @transform_1, window_bounds = array<i64: 32, 64>}, {transform_indices = @transform_2, window_bounds = array<i64: 1, 64>}, {transform_indices = @transform_3, window_bounds = array<i64: 16, 64>}]} {
    %c0_i32 = arith.constant 0 : i32
    %0 = arith.cmpi eq, %arg2, %c0_i32 : i32
    %1 = arith.extui %0 : i1 to i32
    %c0_i32_0 = arith.constant 0 : i32
    %2 = arith.cmpi ne, %1, %c0_i32_0 : i32
    scf.if %2 {
      %cst_10 = arith.constant 0.000000e+00 : f32
      %12 = vector.broadcast %cst_10 : f32 to vector<16x64xf32>
      %c0_11 = arith.constant 0 : index
      %c0_12 = arith.constant 0 : index
      %13 = vector.load %arg7[%c0_11, %c0_12] : memref<16x64xf32, #tpu.memory_space<vmem>>, vector<16x64xf32>
      tpu.vector_store %arg7[%c0_11, %c0_12], %12 {strides = array<i32>} : memref<16x64xf32, #tpu.memory_space<vmem>>, vector<16x64xf32>,
    } else {
    }
    %c0 = arith.constant 0 : index
    %c0_1 = arith.constant 0 : index
    %3 = vector.load %arg7[%c0, %c0_1] : memref<16x64xf32, #tpu.memory_space<vmem>>, vector<16x64xf32>
    %c0_2 = arith.constant 0 : index
    %c0_3 = arith.constant 0 : index
    %4 = vector.load %arg3[%c0_2, %c0_3] : memref<16x32xbf16, #tpu.memory_space<vmem>>, vector<16x32xbf16>
    %c0_4 = arith.constant 0 : index
    %c0_5 = arith.constant 0 : index
    %5 = vector.load %arg4[%c0_4, %c0_5] : memref<32x64xbf16, #tpu.memory_space<vmem>>, vector<32x64xbf16>
    %cst = arith.constant dense<0.000000e+00> : vector<16x64xf32>
    %6 = tpu.matmul %4, %5, %cst {dimension_numbers = #tpu.dot_dimension_numbers<[1], [0], [0], [1], [0, 0, 1, 1], [], []>} : vector<16x32xbf16>, vector<32x64xbf16>, vector<16x64xf32> -> vector<16x64xf32>
    %7 = arith.addf %3, %6 : vector<16x64xf32>
    %c0_6 = arith.constant 0 : index
    %c0_7 = arith.constant 0 : index
    %8 = vector.load %arg7[%c0_6, %c0_7] : memref<16x64xf32, #tpu.memory_space<vmem>>, vector<16x64xf32>
    tpu.vector_store %arg7[%c0_6, %c0_7], %7 {strides = array<i32>} : memref<16x64xf32, #tpu.memory_space<vmem>>, vector<16x64xf32>,
    %c0_i32_8 = arith.constant 0 : i32
    %9 = arith.cmpi eq, %arg2, %c0_i32_8 : i32
    %10 = arith.extui %9 : i1 to i32
    %c0_i32_9 = arith.constant 0 : i32
    %11 = arith.cmpi ne, %10, %c0_i32_9 : i32
    scf.if %11 {
      %c0_10 = arith.constant 0 : index
      %c0_11 = arith.constant 0 : index
      %12 = vector.load %arg7[%c0_10, %c0_11] : memref<16x64xf32, #tpu.memory_space<vmem>>, vector<16x64xf32>
      %c0_12 = arith.constant 0 : index
      %c0_13 = arith.constant 0 : index
      %13 = vector.load %arg5[%c0_12, %c0_13] : memref<1x64xf32, #tpu.memory_space<vmem>>, vector<1x64xf32>
      %14 = vector.broadcast %13 : vector<1x64xf32> to vector<16x64xf32>
      %15 = arith.addf %12, %14 : vector<16x64xf32>
      %cst_14 = arith.constant 5.000000e-01 : f32
      %16 = vector.broadcast %cst_14 : f32 to vector<16x64xf32>
      %17 = arith.mulf %16, %15 : vector<16x64xf32>
      %cst_15 = arith.constant 4.471500e-02 : f32
      %18 = vector.broadcast %cst_15 : f32 to vector<16x64xf32>
      %19 = arith.mulf %18, %15 : vector<16x64xf32>
      %20 = arith.mulf %19, %15 : vector<16x64xf32>
      %21 = arith.mulf %20, %15 : vector<16x64xf32>
      %22 = arith.addf %15, %21 : vector<16x64xf32>
      %cst_16 = arith.constant 0.797884583 : f32
      %23 = vector.broadcast %cst_16 : f32 to vector<16x64xf32>
      %24 = arith.mulf %23, %22 : vector<16x64xf32>
      %25 = math.tanh %24 : vector<16x64xf32>
      %cst_17 = arith.constant 1.000000e+00 : f32
      %26 = vector.broadcast %cst_17 : f32 to vector<16x64xf32>
      %27 = arith.addf %26, %25 : vector<16x64xf32>
      %28 = arith.mulf %17, %27 : vector<16x64xf32>
      %29 = arith.truncf %28 : vector<16x64xf32> to vector<16x64xbf16>
      %c0_18 = arith.constant 0 : index
      %c0_19 = arith.constant 0 : index
      %30 = vector.load %arg6[%c0_18, %c0_19] : memref<16x64xbf16, #tpu.memory_space<vmem>>, vector<16x64xbf16>
      tpu.vector_store %arg6[%c0_18, %c0_19], %29 {strides = array<i32>} : memref<16x64xbf16, #tpu.memory_space<vmem>>, vector<16x64xbf16>,
    } else {
    }
    return
  }
  func.func @transform_0(%arg0: i32, %arg1: i32, %arg2: i32) -> (i32, i32) {
    %c0_i32 = arith.constant 0 : i32
    return %arg0, %arg2 : i32, i32
  }
  func.func @transform_1(%arg0: i32, %arg1: i32, %arg2: i32) -> (i32, i32) {
    %c0_i32 = arith.constant 0 : i32
    return %arg2, %arg1 : i32, i32
  }
  func.func @transform_2(%arg0: i32, %arg1: i32, %arg2: i32) -> (i32, i32) {
    %c0_i32 = arith.constant 0 : i32
    %c0_i32_0 = arith.constant 0 : i32
    return %c0_i32, %arg1 : i32, i32
  }
  func.func @transform_3(%arg0: i32, %arg1: i32, %arg2: i32) -> (i32, i32) {
    %c0_i32 = arith.constant 0 : i32
    return %arg0, %arg1 : i32, i32
  }
}

module attributes {stable_mosaic.version = 11 : i64} {
  func.func @_dense_res_ln_kernel(%arg0: i32, %arg1: i32, %arg2: memref<16x64xbf16, #tpu.memory_space<vmem>>, %arg3: memref<64x32xbf16, #tpu.memory_space<vmem>>, %arg4: memref<1x32xf32, #tpu.memory_space<vmem>>, %arg5: memref<16x32xbf16, #tpu.memory_space<vmem>>, %arg6: memref<1x32xf32, #tpu.memory_space<vmem>>, %arg7: memref<1x32xf32, #tpu.memory_space<vmem>>, %arg8: memref<16x32xbf16, #tpu.memory_space<vmem>>, %arg9: memref<16x32xf32, #tpu.memory_space<vmem>>) attributes {dimension_semantics = [#tpu.dimension_semantics<parallel>, #tpu.dimension_semantics<arbitrary>], iteration_bounds = array<i64: 1, 1>, scalar_prefetch = 0 : i64, scratch_operands = 1 : i64, tpu.core_type = #tpu.core_type<tc>, window_params = [{transform_indices = @transform_0, window_bounds = array<i64: 16, 64>}, {transform_indices = @transform_1, window_bounds = array<i64: 64, 32>}, {pipeline_mode = #tpu.pipeline_mode<synchronous>, transform_indices = @transform_2, window_bounds = array<i64: 1, 32>}, {transform_indices = @transform_3, window_bounds = array<i64: 16, 32>}, {pipeline_mode = #tpu.pipeline_mode<synchronous>, transform_indices = @transform_4, window_bounds = array<i64: 1, 32>}, {pipeline_mode = #tpu.pipeline_mode<synchronous>, transform_indices = @transform_5, window_bounds = array<i64: 1, 32>}, {transform_indices = @transform_6, window_bounds = array<i64: 16, 32>}]} {
    %c0_i32 = arith.constant 0 : i32
    %0 = arith.cmpi eq, %arg1, %c0_i32 : i32
    %1 = arith.extui %0 : i1 to i32
    %c0_i32_0 = arith.constant 0 : i32
    %2 = arith.cmpi ne, %1, %c0_i32_0 : i32
    scf.if %2 {
      %cst_10 = arith.constant 0.000000e+00 : f32
      %12 = vector.broadcast %cst_10 : f32 to vector<16x32xf32>
      %c0_11 = arith.constant 0 : index
      %c0_12 = arith.constant 0 : index
      %13 = vector.load %arg9[%c0_11, %c0_12] : memref<16x32xf32, #tpu.memory_space<vmem>>, vector<16x32xf32>
      tpu.vector_store %arg9[%c0_11, %c0_12], %12 {strides = array<i32>} : memref<16x32xf32, #tpu.memory_space<vmem>>, vector<16x32xf32>,
    } else {
    }
    %c0 = arith.constant 0 : index
    %c0_1 = arith.constant 0 : index
    %3 = vector.load %arg9[%c0, %c0_1] : memref<16x32xf32, #tpu.memory_space<vmem>>, vector<16x32xf32>
    %c0_2 = arith.constant 0 : index
    %c0_3 = arith.constant 0 : index
    %4 = vector.load %arg2[%c0_2, %c0_3] : memref<16x64xbf16, #tpu.memory_space<vmem>>, vector<16x64xbf16>
    %c0_4 = arith.constant 0 : index
    %c0_5 = arith.constant 0 : index
    %5 = vector.load %arg3[%c0_4, %c0_5] : memref<64x32xbf16, #tpu.memory_space<vmem>>, vector<64x32xbf16>
    %cst = arith.constant dense<0.000000e+00> : vector<16x32xf32>
    %6 = tpu.matmul %4, %5, %cst {dimension_numbers = #tpu.dot_dimension_numbers<[1], [0], [0], [1], [0, 0, 1, 1], [], []>} : vector<16x64xbf16>, vector<64x32xbf16>, vector<16x32xf32> -> vector<16x32xf32>
    %7 = arith.addf %3, %6 : vector<16x32xf32>
    %c0_6 = arith.constant 0 : index
    %c0_7 = arith.constant 0 : index
    %8 = vector.load %arg9[%c0_6, %c0_7] : memref<16x32xf32, #tpu.memory_space<vmem>>, vector<16x32xf32>
    tpu.vector_store %arg9[%c0_6, %c0_7], %7 {strides = array<i32>} : memref<16x32xf32, #tpu.memory_space<vmem>>, vector<16x32xf32>,
    %c0_i32_8 = arith.constant 0 : i32
    %9 = arith.cmpi eq, %arg1, %c0_i32_8 : i32
    %10 = arith.extui %9 : i1 to i32
    %c0_i32_9 = arith.constant 0 : i32
    %11 = arith.cmpi ne, %10, %c0_i32_9 : i32
    scf.if %11 {
      %c0_10 = arith.constant 0 : index
      %c0_11 = arith.constant 0 : index
      %12 = vector.load %arg9[%c0_10, %c0_11] : memref<16x32xf32, #tpu.memory_space<vmem>>, vector<16x32xf32>
      %c0_12 = arith.constant 0 : index
      %c0_13 = arith.constant 0 : index
      %13 = vector.load %arg4[%c0_12, %c0_13] : memref<1x32xf32, #tpu.memory_space<vmem>>, vector<1x32xf32>
      %14 = vector.broadcast %13 : vector<1x32xf32> to vector<16x32xf32>
      %15 = arith.addf %12, %14 : vector<16x32xf32>
      %c0_14 = arith.constant 0 : index
      %c0_15 = arith.constant 0 : index
      %16 = vector.load %arg5[%c0_14, %c0_15] : memref<16x32xbf16, #tpu.memory_space<vmem>>, vector<16x32xbf16>
      %17 = arith.extf %16 : vector<16x32xbf16> to vector<16x32xf32>
      %18 = arith.addf %15, %17 : vector<16x32xf32>
      %cst_16 = arith.constant dense<0.000000e+00> : vector<16xf32>
      %19 = vector.multi_reduction <add>, %18, %cst_16 [1] : vector<16x32xf32> to vector<16xf32>
      %20 = vector.shape_cast %19 : vector<16xf32> to vector<16x1xf32>
      %cst_17 = arith.constant 3.200000e+01 : f32
      %21 = vector.broadcast %cst_17 : f32 to vector<16x1xf32>
      %22 = arith.divf %20, %21 : vector<16x1xf32>
      %23 = vector.broadcast %22 : vector<16x1xf32> to vector<16x32xf32>
      %24 = arith.subf %18, %23 : vector<16x32xf32>
      %25 = arith.mulf %24, %24 : vector<16x32xf32>
      %cst_18 = arith.constant dense<0.000000e+00> : vector<16xf32>
      %26 = vector.multi_reduction <add>, %25, %cst_18 [1] : vector<16x32xf32> to vector<16xf32>
      %27 = vector.shape_cast %26 : vector<16xf32> to vector<16x1xf32>
      %cst_19 = arith.constant 3.200000e+01 : f32
      %28 = vector.broadcast %cst_19 : f32 to vector<16x1xf32>
      %29 = arith.divf %27, %28 : vector<16x1xf32>
      %cst_20 = arith.constant 9.99999974E-6 : f32
      %30 = vector.broadcast %cst_20 : f32 to vector<16x1xf32>
      %31 = arith.addf %29, %30 : vector<16x1xf32>
      %32 = math.rsqrt %31 : vector<16x1xf32>
      %33 = vector.broadcast %32 : vector<16x1xf32> to vector<16x32xf32>
      %34 = arith.mulf %24, %33 : vector<16x32xf32>
      %c0_21 = arith.constant 0 : index
      %c0_22 = arith.constant 0 : index
      %35 = vector.load %arg6[%c0_21, %c0_22] : memref<1x32xf32, #tpu.memory_space<vmem>>, vector<1x32xf32>
      %36 = vector.broadcast %35 : vector<1x32xf32> to vector<16x32xf32>
      %37 = arith.mulf %34, %36 : vector<16x32xf32>
      %c0_23 = arith.constant 0 : index
      %c0_24 = arith.constant 0 : index
      %38 = vector.load %arg7[%c0_23, %c0_24] : memref<1x32xf32, #tpu.memory_space<vmem>>, vector<1x32xf32>
      %39 = vector.broadcast %38 : vector<1x32xf32> to vector<16x32xf32>
      %40 = arith.addf %37, %39 : vector<16x32xf32>
      %41 = arith.truncf %40 : vector<16x32xf32> to vector<16x32xbf16>
      %c0_25 = arith.constant 0 : index
      %c0_26 = arith.constant 0 : index
      %42 = vector.load %arg8[%c0_25, %c0_26] : memref<16x32xbf16, #tpu.memory_space<vmem>>, vector<16x32xbf16>
      tpu.vector_store %arg8[%c0_25, %c0_26], %41 {strides = array<i32>} : memref<16x32xbf16, #tpu.memory_space<vmem>>, vector<16x32xbf16>,
    } else {
    }
    return
  }
  func.func @transform_0(%arg0: i32, %arg1: i32) -> (i32, i32) {
    %c0_i32 = arith.constant 0 : i32
    return %arg0, %arg1 : i32, i32
  }
  func.func @transform_1(%arg0: i32, %arg1: i32) -> (i32, i32) {
    %c0_i32 = arith.constant 0 : i32
    %c0_i32_0 = arith.constant 0 : i32
    return %arg1, %c0_i32 : i32, i32
  }
  func.func @transform_2(%arg0: i32, %arg1: i32) -> (i32, i32) {
    %c0_i32 = arith.constant 0 : i32
    %c0_i32_0 = arith.constant 0 : i32
    %c0_i32_1 = arith.constant 0 : i32
    return %c0_i32, %c0_i32_0 : i32, i32
  }
  func.func @transform_3(%arg0: i32, %arg1: i32) -> (i32, i32) {
    %c0_i32 = arith.constant 0 : i32
    %c0_i32_0 = arith.constant 0 : i32
    return %arg0, %c0_i32 : i32, i32
  }
  func.func @transform_4(%arg0: i32, %arg1: i32) -> (i32, i32) {
    %c0_i32 = arith.constant 0 : i32
    %c0_i32_0 = arith.constant 0 : i32
    %c0_i32_1 = arith.constant 0 : i32
    return %c0_i32, %c0_i32_0 : i32, i32
  }
  func.func @transform_5(%arg0: i32, %arg1: i32) -> (i32, i32) {
    %c0_i32 = arith.constant 0 : i32
    %c0_i32_0 = arith.constant 0 : i32
    %c0_i32_1 = arith.constant 0 : i32
    return %c0_i32, %c0_i32_0 : i32, i32
  }
  func.func @transform_6(%arg0: i32, %arg1: i32) -> (i32, i32) {
    %c0_i32 = arith.constant 0 : i32
    %c0_i32_0 = arith.constant 0 : i32
    return %arg0, %c0_i32 : i32, i32
  }
}

module attributes {stable_mosaic.version = 11 : i64} {
  func.func @_pool_reg_kernel(%arg0: i32, %arg1: memref<2x32xbf16, #tpu.memory_space<vmem>>, %arg2: memref<32x32xbf16, #tpu.memory_space<vmem>>, %arg3: memref<1x32xf32, #tpu.memory_space<vmem>>, %arg4: memref<32x1xbf16, #tpu.memory_space<vmem>>, %arg5: memref<1x1xf32, #tpu.memory_space<vmem>>, %arg6: memref<2x1xf32, #tpu.memory_space<vmem>>) attributes {dimension_semantics = [#tpu.dimension_semantics<arbitrary>], iteration_bounds = array<i64: 1>, scalar_prefetch = 0 : i64, scratch_operands = 0 : i64, tpu.core_type = #tpu.core_type<tc>, window_params = [{pipeline_mode = #tpu.pipeline_mode<synchronous>, transform_indices = @transform_0, window_bounds = array<i64: 2, 32>}, {pipeline_mode = #tpu.pipeline_mode<synchronous>, transform_indices = @transform_1, window_bounds = array<i64: 32, 32>}, {pipeline_mode = #tpu.pipeline_mode<synchronous>, transform_indices = @transform_2, window_bounds = array<i64: 1, 32>}, {pipeline_mode = #tpu.pipeline_mode<synchronous>, transform_indices = @transform_3, window_bounds = array<i64: 32, 1>}, {pipeline_mode = #tpu.pipeline_mode<synchronous>, transform_indices = @transform_4, window_bounds = array<i64: 1, 1>}, {pipeline_mode = #tpu.pipeline_mode<synchronous>, transform_indices = @transform_5, window_bounds = array<i64: 2, 1>}]} {
    %c0 = arith.constant 0 : index
    %c0_0 = arith.constant 0 : index
    %0 = vector.load %arg1[%c0, %c0_0] : memref<2x32xbf16, #tpu.memory_space<vmem>>, vector<2x32xbf16>
    %c0_1 = arith.constant 0 : index
    %c0_2 = arith.constant 0 : index
    %1 = vector.load %arg2[%c0_1, %c0_2] : memref<32x32xbf16, #tpu.memory_space<vmem>>, vector<32x32xbf16>
    %cst = arith.constant dense<0.000000e+00> : vector<2x32xf32>
    %2 = tpu.matmul %0, %1, %cst {dimension_numbers = #tpu.dot_dimension_numbers<[1], [0], [0], [1], [0, 0, 1, 1], [], []>} : vector<2x32xbf16>, vector<32x32xbf16>, vector<2x32xf32> -> vector<2x32xf32>
    %c0_3 = arith.constant 0 : index
    %c0_4 = arith.constant 0 : index
    %3 = vector.load %arg3[%c0_3, %c0_4] : memref<1x32xf32, #tpu.memory_space<vmem>>, vector<1x32xf32>
    %4 = vector.broadcast %3 : vector<1x32xf32> to vector<2x32xf32>
    %5 = arith.addf %2, %4 : vector<2x32xf32>
    %6 = math.tanh %5 : vector<2x32xf32>
    %7 = arith.truncf %6 : vector<2x32xf32> to vector<2x32xbf16>
    %c0_5 = arith.constant 0 : index
    %c0_6 = arith.constant 0 : index
    %8 = vector.load %arg4[%c0_5, %c0_6] : memref<32x1xbf16, #tpu.memory_space<vmem>>, vector<32x1xbf16>
    %cst_7 = arith.constant dense<0.000000e+00> : vector<2x1xf32>
    %9 = tpu.matmul %7, %8, %cst_7 {dimension_numbers = #tpu.dot_dimension_numbers<[1], [0], [0], [1], [0, 0, 1, 1], [], []>} : vector<2x32xbf16>, vector<32x1xbf16>, vector<2x1xf32> -> vector<2x1xf32>
    %c0_8 = arith.constant 0 : index
    %c0_9 = arith.constant 0 : index
    %10 = vector.load %arg5[%c0_8, %c0_9] : memref<1x1xf32, #tpu.memory_space<vmem>>, vector<1x1xf32>
    %11 = vector.broadcast %10 : vector<1x1xf32> to vector<2x1xf32>
    %12 = arith.addf %9, %11 : vector<2x1xf32>
    %c0_10 = arith.constant 0 : index
    %c0_11 = arith.constant 0 : index
    %13 = vector.load %arg6[%c0_10, %c0_11] : memref<2x1xf32, #tpu.memory_space<vmem>>, vector<2x1xf32>
    tpu.vector_store %arg6[%c0_10, %c0_11], %12 {strides = array<i32>} : memref<2x1xf32, #tpu.memory_space<vmem>>, vector<2x1xf32>,
    return
  }
  func.func @transform_0(%arg0: i32) -> (i32, i32) {
    %c0_i32 = arith.constant 0 : i32
    %c0_i32_0 = arith.constant 0 : i32
    %c0_i32_1 = arith.constant 0 : i32
    return %c0_i32, %c0_i32_0 : i32, i32
  }
  func.func @transform_1(%arg0: i32) -> (i32, i32) {
    %c0_i32 = arith.constant 0 : i32
    %c0_i32_0 = arith.constant 0 : i32
    %c0_i32_1 = arith.constant 0 : i32
    return %c0_i32, %c0_i32_0 : i32, i32
  }
  func.func @transform_2(%arg0: i32) -> (i32, i32) {
    %c0_i32 = arith.constant 0 : i32
    %c0_i32_0 = arith.constant 0 : i32
    %c0_i32_1 = arith.constant 0 : i32
    return %c0_i32, %c0_i32_0 : i32, i32
  }
  func.func @transform_3(%arg0: i32) -> (i32, i32) {
    %c0_i32 = arith.constant 0 : i32
    %c0_i32_0 = arith.constant 0 : i32
    %c0_i32_1 = arith.constant 0 : i32
    return %c0_i32, %c0_i32_0 : i32, i32
  }
  func.func @transform_4(%arg0: i32) -> (i32, i32) {
    %c0_i32 = arith.constant 0 : i32
    %c0_i32_0 = arith.constant 0 : i32
    %c0_i32_1 = arith.constant 0 : i32
    return %c0_i32, %c0_i32_0 : i32, i32
  }
  func.func @transform_5(%arg0: i32) -> (i32, i32) {
    %c0_i32 = arith.constant 0 : i32
    %c0_i32_0 = arith.constant 0 : i32
    %c0_i32_1 = arith.constant 0 : i32
    return %c0_i32, %c0_i32_0 : i32, i32
  }
}

</mosaic_0001>

<llo_original>
// kernel: roberta_regressor_forward.15
$region0: #{roberta_regressor_forward.15}
  #allocation0 [shape = 'u32[]', space=smem, size = 0x4, offset = 0x4, fixed_abs, tag = 'smem constant byte address 0x4 - core index']
  #allocation1 [shape = 'u32[144,128]{1,0:T(1,128)}', space=vmem, size = 0x12000, scoped, tag = 'internal scratch']
  #allocation2 [shape = 'f32[16,32]{1,0:T(8,128)}', space=vmem, size = 0x2000, scoped, tag = 'scratch operand']
  %s0 = inlined_call_operand.vmem [shape: bf16[16,32], index: 0, kind: input, shape index: {}]
  %s1 = inlined_call_operand.vmem [shape: bf16[32,32], index: 1, kind: input, shape index: {}]
  %s2 = inlined_call_operand.vmem [shape: f32[1,32], index: 2, kind: input, shape index: {}]
  %s3 = inlined_call_operand.vmem [shape: bf16[16,32], index: 3, kind: input, shape index: {}]
  %s4 = inlined_call_operand.vmem [shape: f32[1,32], index: 4, kind: input, shape index: {}]
  %s5 = inlined_call_operand.vmem [shape: f32[1,32], index: 5, kind: input, shape index: {}]
  %s6 = inlined_call_operand.vmem [shape: bf16[16,32], index: 6, kind: output, shape index: {}]
  %s7 = sld [smem:[#allocation0]]
  $region42: #{roberta_regressor_forward.15} parent=0
    _
  %s9 = ssub.s32 1, %s7
  %s10 = scalar_select 0, %s9, %s7
  // Predicated region
  $region2: #{roberta_regressor_forward.15} parent=0 // pred_check
    _
  $region3: #{roberta_regressor_forward.15} parent=0 // pred_check_branch
    %12 = sbr.rel (0) target = $region5
  $region4: #{roberta_regressor_forward.15} parent=0 // pred_region
    _
  $region5: #{roberta_regressor_forward.15} parent=0 // pred_fallthru
    _
  // Predicated region
  $region6: #{roberta_regressor_forward.15} parent=0 // pred_check
    _
  $region7: #{roberta_regressor_forward.15} parent=0 // pred_check_branch
    %14 = sbr.rel (0) target = $region9
  $region8: #{roberta_regressor_forward.15} parent=0 // pred_region
    _
  $region9: #{roberta_regressor_forward.15} parent=0 // pred_fallthru
    _
  // Predicated region
  $region10: #{roberta_regressor_forward.15} parent=0 // pred_check
    _
  $region11: #{roberta_regressor_forward.15} parent=0 // pred_check_branch
    %16 = sbr.rel (0) target = $region13
  $region12: #{roberta_regressor_forward.15} parent=0 // pred_region
    _
  $region13: #{roberta_regressor_forward.15} parent=0 // pred_fallthru
    _
  // Predicated region
  $region14: #{roberta_regressor_forward.15} parent=0 // pred_check
    _
  $region15: #{roberta_regressor_forward.15} parent=0 // pred_check_branch
    %18 = sbr.rel (0) target = $region17
  $region16: #{roberta_regressor_forward.15} parent=0 // pred_region
    _
  $region17: #{roberta_regressor_forward.15} parent=0 // pred_fallthru
    _
  // Predicated region
  $region18: #{roberta_regressor_forward.15} parent=0 // pred_check
    _
  $region19: #{roberta_regressor_forward.15} parent=0 // pred_check_branch
    %20 = sbr.rel (0) target = $region21
  $region20: #{roberta_regressor_forward.15} parent=0 // pred_region
    _
  $region21: #{roberta_regressor_forward.15} parent=0 // pred_fallthru
    _
  // Predicated region
  $region22: #{roberta_regressor_forward.15} parent=0 // pred_check
    _
  $region23: #{roberta_regressor_forward.15} parent=0 // pred_check_branch
    %22 = sbr.rel (0) target = $region25
  $region24: #{roberta_regressor_forward.15} parent=0 // pred_region
    _
  $region25: #{roberta_regressor_forward.15} parent=0 // pred_fallthru
    _
  %p24 = scmp.eq.s32.totalorder 0, 0
  // Predicated region
  $region26: #{roberta_regressor_forward.15} parent=0 // pred_check
    %p25 = pneg %p24
  $region27: #{roberta_regressor_forward.15} parent=0 // pred_check_branch
    %27 = sbr.rel (%p25) target = $region29
  $region28: #{roberta_regressor_forward.15} parent=0 // pred_region
    %vm28 = vcmask 261120
    %29 = vst.msk [vmem:[#allocation2] sm:$0xff] %vm28, 0.0
    %30 = vst.msk [vmem:[#allocation2 + $0x8] sm:$0xff] %vm28, 0.0
  $region29: #{roberta_regressor_forward.15} parent=0 // pred_fallthru
    _
  %v31 = vld [vmem:[#allocation2] sm:$0xff]
  %v32 = vld [vmem:[#allocation2 + $0x8] sm:$0xff]
  %v33 = vld [vmem:[%s0] sm:$0xf]
  %v34 = vld [vmem:[%s0 + $0x4] sm:$0xf]
  %v35 = vld [vmem:[%s1] sm:$0xf]
  %v36 = vld [vmem:[%s1 + $0x4] sm:$0xf]
  %v37 = vld [vmem:[%s1 + $0x8] sm:$0xf]
  %v38 = vld [vmem:[%s1 + $0xc] sm:$0xf]
  %v41 = vunpack.c.l.b16 %v33
  %v42 = vunpack.c.l.b16 %v34
  %v43 = vpack.c.b16 %v42, %v41
  %v48 = vunpack.c.l.b16 %v35
  %v49 = vunpack.c.l.b16 %v36
  %v50 = vunpack.c.l.b16 %v37
  %v51 = vunpack.c.l.b16 %v38
  %v52 = vpack.c.b16 %v49, %v48
  %v53 = vpack.c.b16 %v51, %v50
  %vm56 = vcmask 261120
  %v58 = vsel %vm56, %v43, 0
  %60 = vmatprep.subr.bf16.mxu0 0
  %61 = vmatpush1.bf16.msra.mxu0 0
  %62 = vmatprep.subr.bf16.mxu0 0
  %63 = vmatpush1.bf16.msra.mxu0 0
  %64 = vmatprep.subr.bf16.mxu0 0
  %65 = vmatpush1.bf16.msra.mxu0 0
  %66 = vmatprep.subr.bf16.mxu0 0
  %67 = vmatpush1.bf16.msra.mxu0 0
  %68 = vmatprep.subr.bf16.mxu0 0
  %69 = vmatpush1.bf16.msra.mxu0 0
  %70 = vmatprep.subr.bf16.mxu0 0
  %71 = vmatpush1.bf16.msra.mxu0 0
  %72 = vmatprep.subr.bf16.mxu0 0
  %73 = vmatpush1.bf16.msra.mxu0 %v53
  %74 = vmatprep.subr.bf16.mxu0 0
  %75 = vmatpush1.bf16.msra.mxu0 %v52
  %76 = vmatprep.subr.bf16.mxu0 0
  %77 = vmatpush2.bf16.msra.mxu0 0
  %78 = vmatprep.subr.bf16.mxu0 0
  %79 = vmatpush2.bf16.msra.mxu0 0
  %80 = vmatprep.subr.bf16.mxu0 0
  %81 = vmatpush2.bf16.msra.mxu0 0
  %82 = vmatprep.subr.bf16.mxu0 0
  %83 = vmatpush2.bf16.msra.mxu0 0
  %84 = vmatprep.subr.bf16.mxu0 0
  %85 = vmatpush2.bf16.msra.mxu0 0
  %86 = vmatprep.subr.bf16.mxu0 0
  %87 = vmatpush2.bf16.msra.mxu0 0
  %88 = vmatprep.subr.bf16.mxu0 0
  %89 = vmatpush2.bf16.msra.mxu0 0
  %90 = vmatprep.subr.bf16.mxu0 0
  %91 = vmatpush2.bf16.msra.mxu0 0
  %92 = vmatprep.mubr.bf16.mxu0 0
  %93 = vmatmul.mubr.bf16.gmra.mxu0 %v58
  %v94 = vpop.f32.mrf.mxu0
  %v95 = vadd.f32 0.0, %v94
  %v96 = vpop.f32.mrf.mxu0
  %v97 = vpop.f32.mrf.mxu0
  %v98 = vadd.f32 0.0, %v97
  %v99 = vpop.f32.mrf.mxu0
  %100 = vdwg.mxu0
  %v101 = vadd.f32 %v31, %v95
  %v102 = vadd.f32 %v32, %v98
  %103 = vst.msk [vmem:[#allocation2] sm:$0xff] %vm56, %v101
  %104 = vst.msk [vmem:[#allocation2 + $0x8] sm:$0xff] %vm56, %v102
  // Predicated region
  $region30: #{roberta_regressor_forward.15} parent=0 // pred_check
    %p105 = pneg %p24
  $region31: #{roberta_regressor_forward.15} parent=0 // pred_check_branch
    %107 = sbr.rel (%p105) target = $region33
  $region32: #{roberta_regressor_forward.15} parent=0 // pred_region
    %v108 = vld [vmem:[#allocation2] sm:$0xff]
    %v109 = vld [vmem:[#allocation2 + $0x8] sm:$0xff]
    %v110 = vld [vmem:[%s2] sm:$0x1]
    %v112 = vlaneseq
    %v113 = vshrl.u32 %v112, 7
    %v114 = vsub.s32 0, %v113
    %v115 = vrot.slane %v110, %v114
    %v117 = vadd.f32 %v108, %v115
    %v118 = vadd.f32 %v109, %v115
    %v119 = vld [vmem:[%s3] sm:$0xf]
    %v120 = vld [vmem:[%s3 + $0x4] sm:$0xf]
    %v121 = vunpack.c.l.bf16 %v119
    %v122 = vunpack.c.l.bf16 %v120
    %v123 = vadd.f32 %v117, %v121
    %v124 = vadd.f32 %v118, %v122
    %v125 = vsel %vm56, %v123, 0.0
    %126 = vadd.xlane.f32.xlu0 %v125
    %v127 = vpop.xlane.xlu0 %126
    %v128 = vsel %vm56, %v124, 0.0
    %129 = vadd.xlane.f32.xlu0 %v128
    %v130 = vpop.xlane.xlu0 %129
    %v131 = vrcp.pop 32.0
    %v132 = vmul.f32 %v127, %v131
    %v133 = vmul.f32 %v130, %v131
    %v134 = vsub.f32 %v123, %v132
    %v135 = vsub.f32 %v124, %v133
    %v136 = vmul.f32 %v134, %v134
    %v137 = vmul.f32 %v135, %v135
    %v138 = vsel %vm56, %v136, 0.0
    %139 = vadd.xlane.f32.xlu0 %v138
    %v140 = vpop.xlane.xlu0 %139
    %v141 = vsel %vm56, %v137, 0.0
    %142 = vadd.xlane.f32.xlu0 %v141
    %v143 = vpop.xlane.xlu0 %142
    %v144 = vmul.f32 %v140, %v131
    %v145 = vmul.f32 %v143, %v131
    %v146 = vadd.f32 %v144, 1e-05
    %v147 = vadd.f32 %v145, 1e-05
    %v148 = vrsqrt.pop %v146
    %v149 = vrsqrt.pop %v147
    %v150 = vmul.f32 %v134, %v148
    %v151 = vmul.f32 %v135, %v149
    %v152 = vld [vmem:[%s4] sm:$0x1]
    %v154 = vlaneseq
    %v155 = vshrl.u32 %v154, 7
    %v156 = vsub.s32 0, %v155
    %v157 = vrot.slane %v152, %v156
    %v159 = vmul.f32 %v150, %v157
    %v160 = vmul.f32 %v151, %v157
    %v161 = vld [vmem:[%s5] sm:$0x1]
    %v163 = vlaneseq
    %v164 = vshrl.u32 %v163, 7
    %v165 = vsub.s32 0, %v164
    %v166 = vrot.slane %v161, %v165
    %v168 = vadd.f32 %v159, %v166
    %v169 = vadd.f32 %v160, %v166
    %v170 = vpack.c.bf16 %v169, %v168
    %v172 = vunpack.c.l.b16 %v170
    %v173 = vunpack.c.h.b16 %v170
    %v174 = vpack.c.b16 %v172, %v172
    %v175 = vpack.c.b16 %v173, %v173
    %vm178 = vcmask 257024
    %179 = vst.msk [vmem:[%s6] sm:$0xf] %vm178, %v174
    %180 = vst.msk [vmem:[%s6 + $0x4] sm:$0xf] %vm178, %v175
  $region33: #{roberta_regressor_forward.15} parent=0 // pred_fallthru
    _
  // Predicated region
  $region34: #{roberta_regressor_forward.15} parent=0 // pred_check
    _
  $region35: #{roberta_regressor_forward.15} parent=0 // pred_check_branch
    %182 = sbr.rel (0) target = $region37
  $region36: #{roberta_regressor_forward.15} parent=0 // pred_region
    _
  $region37: #{roberta_regressor_forward.15} parent=0 // pred_fallthru
    _
  // Predicated region
  $region38: #{roberta_regressor_forward.15} parent=0 // pred_check
    _
  $region39: #{roberta_regressor_forward.15} parent=0 // pred_check_branch
    %184 = sbr.rel (0) target = $region41
  $region40: #{roberta_regressor_forward.15} parent=0 // pred_region
    _
  $region41: #{roberta_regressor_forward.15} parent=0 // pred_fallthru
    _

// kernel: roberta_regressor_forward.13
$region0: #{roberta_regressor_forward.13}
  #allocation0 [shape = 'u32[]', space=smem, size = 0x4, offset = 0x4, fixed_abs, tag = 'smem constant byte address 0x4 - core index']
  #allocation1 [shape = 'u32[144,128]{1,0:T(1,128)}', space=vmem, size = 0x12000, scoped, tag = 'internal scratch']
  #allocation2 [shape = 'f32[16,96]{1,0:T(8,128)}', space=vmem, size = 0x2000, scoped, tag = 'scratch operand']
  %s0 = inlined_call_operand.vmem [shape: bf16[16,32], index: 0, kind: input, shape index: {}]
  %s1 = inlined_call_operand.vmem [shape: bf16[32,96], index: 1, kind: input, shape index: {}]
  %s2 = inlined_call_operand.vmem [shape: f32[1,96], index: 2, kind: input, shape index: {}]
  %s3 = inlined_call_operand.vmem [shape: bf16[16,96], index: 3, kind: output, shape index: {}]
  %s4 = sld [smem:[#allocation0]]
  $region30: #{roberta_regressor_forward.13} parent=0
    _
  %s6 = ssub.s32 1, %s4
  %s7 = scalar_select 0, %s6, %s4
  // Predicated region
  $region2: #{roberta_regressor_forward.13} parent=0 // pred_check
    _
  $region3: #{roberta_regressor_forward.13} parent=0 // pred_check_branch
    %9 = sbr.rel (0) target = $region5
  $region4: #{roberta_regressor_forward.13} parent=0 // pred_region
    _
  $region5: #{roberta_regressor_forward.13} parent=0 // pred_fallthru
    _
  // Predicated region
  $region6: #{roberta_regressor_forward.13} parent=0 // pred_check
    _
  $region7: #{roberta_regressor_forward.13} parent=0 // pred_check_branch
    %11 = sbr.rel (0) target = $region9
  $region8: #{roberta_regressor_forward.13} parent=0 // pred_region
    _
  $region9: #{roberta_regressor_forward.13} parent=0 // pred_fallthru
    _
  // Predicated region
  $region10: #{roberta_regressor_forward.13} parent=0 // pred_check
    _
  $region11: #{roberta_regressor_forward.13} parent=0 // pred_check_branch
    %13 = sbr.rel (0) target = $region13
  $region12: #{roberta_regressor_forward.13} parent=0 // pred_region
    _
  $region13: #{roberta_regressor_forward.13} parent=0 // pred_fallthru
    _
  %p15 = scmp.eq.s32.totalorder 0, 0
  // Predicated region
  $region14: #{roberta_regressor_forward.13} parent=0 // pred_check
    %p16 = pneg %p15
  $region15: #{roberta_regressor_forward.13} parent=0 // pred_check_branch
    %18 = sbr.rel (%p16) target = $region17
  $region16: #{roberta_regressor_forward.13} parent=0 // pred_region
    %vm19 = vcmask 785408
    %20 = vst.msk [vmem:[#allocation2] sm:$0xff] %vm19, 0.0
    %21 = vst.msk [vmem:[#allocation2 + $0x8] sm:$0xff] %vm19, 0.0
  $region17: #{roberta_regressor_forward.13} parent=0 // pred_fallthru
    _
  %v22 = vld [vmem:[#allocation2] sm:$0xff]
  %v23 = vld [vmem:[#allocation2 + $0x8] sm:$0xff]
  %v24 = vld [vmem:[%s0] sm:$0xf]
  %v25 = vld [vmem:[%s0 + $0x4] sm:$0xf]
  %v26 = vld [vmem:[%s1] sm:$0xf]
  %v27 = vld [vmem:[%s1 + $0x4] sm:$0xf]
  %v28 = vld [vmem:[%s1 + $0x8] sm:$0xf]
  %v29 = vld [vmem:[%s1 + $0xc] sm:$0xf]
  %v32 = vunpack.c.l.b16 %v24
  %v33 = vunpack.c.l.b16 %v25
  %v34 = vpack.c.b16 %v33, %v32
  %v39 = vunpack.c.l.b16 %v26
  %v40 = vunpack.c.l.b16 %v27
  %v41 = vunpack.c.l.b16 %v28
  %v42 = vunpack.c.l.b16 %v29
  %v43 = vpack.c.b16 %v40, %v39
  %v44 = vpack.c.b16 %v42, %v41
  %vm47 = vcmask 261120
  %v49 = vsel %vm47, %v34, 0
  %51 = vmatprep.subr.bf16.mxu0 0
  %52 = vmatpush1.bf16.msra.mxu0 0
  %53 = vmatprep.subr.bf16.mxu0 0
  %54 = vmatpush1.bf16.msra.mxu0 0
  %55 = vmatprep.subr.bf16.mxu0 0
  %56 = vmatpush1.bf16.msra.mxu0 0
  %57 = vmatprep.subr.bf16.mxu0 0
  %58 = vmatpush1.bf16.msra.mxu0 0
  %59 = vmatprep.subr.bf16.mxu0 0
  %60 = vmatpush1.bf16.msra.mxu0 0
  %61 = vmatprep.subr.bf16.mxu0 0
  %62 = vmatpush1.bf16.msra.mxu0 0
  %63 = vmatprep.subr.bf16.mxu0 0
  %64 = vmatpush1.bf16.msra.mxu0 %v44
  %65 = vmatprep.subr.bf16.mxu0 0
  %66 = vmatpush1.bf16.msra.mxu0 %v43
  %67 = vmatprep.subr.bf16.mxu0 0
  %68 = vmatpush2.bf16.msra.mxu0 0
  %69 = vmatprep.subr.bf16.mxu0 0
  %70 = vmatpush2.bf16.msra.mxu0 0
  %71 = vmatprep.subr.bf16.mxu0 0
  %72 = vmatpush2.bf16.msra.mxu0 0
  %73 = vmatprep.subr.bf16.mxu0 0
  %74 = vmatpush2.bf16.msra.mxu0 0
  %75 = vmatprep.subr.bf16.mxu0 0
  %76 = vmatpush2.bf16.msra.mxu0 0
  %77 = vmatprep.subr.bf16.mxu0 0
  %78 = vmatpush2.bf16.msra.mxu0 0
  %79 = vmatprep.subr.bf16.mxu0 0
  %80 = vmatpush2.bf16.msra.mxu0 0
  %81 = vmatprep.subr.bf16.mxu0 0
  %82 = vmatpush2.bf16.msra.mxu0 0
  %83 = vmatprep.mubr.bf16.mxu0 0
  %84 = vmatmul.mubr.bf16.gmra.mxu0 %v49
  %v85 = vpop.f32.mrf.mxu0
  %v86 = vadd.f32 0.0, %v85
  %v87 = vpop.f32.mrf.mxu0
  %v88 = vpop.f32.mrf.mxu0
  %v89 = vadd.f32 0.0, %v88
  %v90 = vpop.f32.mrf.mxu0
  %91 = vdwg.mxu0
  %v92 = vadd.f32 %v22, %v86
  %v93 = vadd.f32 %v23, %v89
  %vm94 = vcmask 785408
  %95 = vst.msk [vmem:[#allocation2] sm:$0xff] %vm94, %v92
  %96 = vst.msk [vmem:[#allocation2 + $0x8] sm:$0xff] %vm94, %v93
  // Predicated region
  $region18: #{roberta_regressor_forward.13} parent=0 // pred_check
    %p97 = pneg %p15
  $region19: #{roberta_regressor_forward.13} parent=0 // pred_check_branch
    %99 = sbr.rel (%p97) target = $region21
  $region20: #{roberta_regressor_forward.13} parent=0 // pred_region
    %v100 = vld [vmem:[#allocation2] sm:$0xff]
    %v101 = vld [vmem:[#allocation2 + $0x8] sm:$0xff]
    %v102 = vld [vmem:[%s2] sm:$0x1]
    %v104 = vlaneseq
    %v105 = vshrl.u32 %v104, 7
    %v106 = vsub.s32 0, %v105
    %v107 = vrot.slane %v102, %v106
    %v109 = vadd.f32 %v100, %v107
    %v110 = vadd.f32 %v101, %v107
    %v111 = vpack.c.bf16 %v110, %v109
    %v113 = vunpack.c.l.b16 %v111
    %v114 = vunpack.c.h.b16 %v111
    %v115 = vpack.c.b16 %v113, %v113
    %v116 = vpack.c.b16 %v114, %v114
    %vm119 = vcmask 781312
    %120 = vst.msk [vmem:[%s3] sm:$0xf] %vm119, %v115
    %121 = vst.msk [vmem:[%s3 + $0x4] sm:$0xf] %vm119, %v116
  $region21: #{roberta_regressor_forward.13} parent=0 // pred_fallthru
    _
  // Predicated region
  $region22: #{roberta_regressor_forward.13} parent=0 // pred_check
    _
  $region23: #{roberta_regressor_forward.13} parent=0 // pred_check_branch
    %123 = sbr.rel (0) target = $region25
  $region24: #{roberta_regressor_forward.13} parent=0 // pred_region
    _
  $region25: #{roberta_regressor_forward.13} parent=0 // pred_fallthru
    _
  // Predicated region
  $region26: #{roberta_regressor_forward.13} parent=0 // pred_check
    _
  $region27: #{roberta_regressor_forward.13} parent=0 // pred_check_branch
    %125 = sbr.rel (0) target = $region29
  $region28: #{roberta_regressor_forward.13} parent=0 // pred_region
    _
  $region29: #{roberta_regressor_forward.13} parent=0 // pred_fallthru
    _

// kernel: roberta_regressor_forward.12
$region0: #{roberta_regressor_forward.12}
  #allocation0 [shape = 'u32[]', space=smem, size = 0x4, offset = 0x4, fixed_abs, tag = 'smem constant byte address 0x4 - core index']
  #allocation1 [shape = 'u32[144,128]{1,0:T(1,128)}', space=vmem, size = 0x12000, scoped, tag = 'internal scratch']
  %s0 = inlined_call_operand.vmem [shape: f32[16,32], index: 0, kind: input, shape index: {}]
  %s1 = inlined_call_operand.vmem [shape: f32[1,32], index: 1, kind: input, shape index: {}]
  %s2 = inlined_call_operand.vmem [shape: f32[1,32], index: 2, kind: input, shape index: {}]
  %s3 = inlined_call_operand.vmem [shape: bf16[16,32], index: 3, kind: output, shape index: {}]
  %s4 = sld [smem:[#allocation0]]
  $region22: #{roberta_regressor_forward.12} parent=0
    _
  %s6 = ssub.s32 1, %s4
  %s7 = scalar_select 0, %s6, %s4
  // Predicated region
  $region2: #{roberta_regressor_forward.12} parent=0 // pred_check
    _
  $region3: #{roberta_regressor_forward.12} parent=0 // pred_check_branch
    %9 = sbr.rel (0) target = $region5
  $region4: #{roberta_regressor_forward.12} parent=0 // pred_region
    _
  $region5: #{roberta_regressor_forward.12} parent=0 // pred_fallthru
    _
  // Predicated region
  $region6: #{roberta_regressor_forward.12} parent=0 // pred_check
    _
  $region7: #{roberta_regressor_forward.12} parent=0 // pred_check_branch
    %11 = sbr.rel (0) target = $region9
  $region8: #{roberta_regressor_forward.12} parent=0 // pred_region
    _
  $region9: #{roberta_regressor_forward.12} parent=0 // pred_fallthru
    _
  // Predicated region
  $region10: #{roberta_regressor_forward.12} parent=0 // pred_check
    _
  $region11: #{roberta_regressor_forward.12} parent=0 // pred_check_branch
    %13 = sbr.rel (0) target = $region13
  $region12: #{roberta_regressor_forward.12} parent=0 // pred_region
    _
  $region13: #{roberta_regressor_forward.12} parent=0 // pred_fallthru
    _
  %v14 = vld [vmem:[%s0] sm:$0xff]
  %v15 = vld [vmem:[%s0 + $0x8] sm:$0xff]
  %vm16 = vcmask 261120
  %v17 = vsel %vm16, %v14, 0.0
  %18 = vadd.xlane.f32.xlu0 %v17
  %v19 = vpop.xlane.xlu0 %18
  %v20 = vsel %vm16, %v15, 0.0
  %21 = vadd.xlane.f32.xlu0 %v20
  %v22 = vpop.xlane.xlu0 %21
  %v23 = vrcp.pop 32.0
  %v24 = vmul.f32 %v19, %v23
  %v25 = vmul.f32 %v22, %v23
  %v26 = vsub.f32 %v14, %v24
  %v27 = vsub.f32 %v15, %v25
  %v28 = vmul.f32 %v26, %v26
  %v29 = vmul.f32 %v27, %v27
  %v30 = vsel %vm16, %v28, 0.0
  %31 = vadd.xlane.f32.xlu0 %v30
  %v32 = vpop.xlane.xlu0 %31
  %v33 = vsel %vm16, %v29, 0.0
  %34 = vadd.xlane.f32.xlu0 %v33
  %v35 = vpop.xlane.xlu0 %34
  %v36 = vmul.f32 %v32, %v23
  %v37 = vmul.f32 %v35, %v23
  %v38 = vadd.f32 %v36, 1e-05
  %v39 = vadd.f32 %v37, 1e-05
  %v40 = vrsqrt.pop %v38
  %v41 = vrsqrt.pop %v39
  %v42 = vmul.f32 %v26, %v40
  %v43 = vmul.f32 %v27, %v41
  %v44 = vld [vmem:[%s1] sm:$0x1]
  %v46 = vlaneseq
  %v47 = vshrl.u32 %v46, 7
  %v48 = vsub.s32 0, %v47
  %v49 = vrot.slane %v44, %v48
  %v51 = vmul.f32 %v42, %v49
  %v52 = vmul.f32 %v43, %v49
  %v53 = vld [vmem:[%s2] sm:$0x1]
  %v55 = vlaneseq
  %v56 = vshrl.u32 %v55, 7
  %v57 = vsub.s32 0, %v56
  %v58 = vrot.slane %v53, %v57
  %v60 = vadd.f32 %v51, %v58
  %v61 = vadd.f32 %v52, %v58
  %v62 = vpack.c.bf16 %v61, %v60
  %v64 = vunpack.c.l.b16 %v62
  %v65 = vunpack.c.h.b16 %v62
  %v66 = vpack.c.b16 %v64, %v64
  %v67 = vpack.c.b16 %v65, %v65
  %vm70 = vcmask 257024
  %71 = vst.msk [vmem:[%s3] sm:$0xf] %vm70, %v66
  %72 = vst.msk [vmem:[%s3 + $0x4] sm:$0xf] %vm70, %v67
  // Predicated region
  $region14: #{roberta_regressor_forward.12} parent=0 // pred_check
    _
  $region15: #{roberta_regressor_forward.12} parent=0 // pred_check_branch
    %74 = sbr.rel (0) target = $region17
  $region16: #{roberta_regressor_forward.12} parent=0 // pred_region
    _
  $region17: #{roberta_regressor_forward.12} parent=0 // pred_fallthru
    _
  // Predicated region
  $region18: #{roberta_regressor_forward.12} parent=0 // pred_check
    _
  $region19: #{roberta_regressor_forward.12} parent=0 // pred_check_branch
    %76 = sbr.rel (0) target = $region21
  $region20: #{roberta_regressor_forward.12} parent=0 // pred_region
    _
  $region21: #{roberta_regressor_forward.12} parent=0 // pred_fallthru
    _

// kernel: roberta_regressor_forward.14
$region0: #{roberta_regressor_forward.14}
  #allocation0 [shape = 'u32[]', space=smem, size = 0x4, offset = 0x4, fixed_abs, tag = 'smem constant byte address 0x4 - core index']
  #allocation1 [shape = 'u32[144,128]{1,0:T(1,128)}', space=vmem, size = 0x12000, scoped, tag = 'internal scratch']
  %s0 = inlined_call_operand.vmem [shape: bf16[16,96], index: 0, kind: input, shape index: {}]
  %s1 = inlined_call_operand.vmem [shape: f32[2,1,8], index: 1, kind: input, shape index: {}]
  %s2 = inlined_call_operand.vmem [shape: bf16[16,32], index: 2, kind: output, shape index: {}]
  %s3 = sld [smem:[#allocation0]]
  $region41: #{roberta_regressor_forward.14} parent=0
    _
  %s5 = ssub.s32 1, %s3
  %s6 = scalar_select 0, %s5, %s3
  loop: start=0, step=1, limit=4
  $region2: #{roberta_regressor_forward.14} parent=0 // loop_pre_header
    _
  $region3: #{roberta_regressor_forward.14} parent=0 // loop_header
    %s8 = sphi 0, %s12
    %p9 = scmp.ge.s32.totalorder %s8, 4
    %s18 = sphi 0, %s20
    %s21 = sphi 0, %s18
    %s22 = sphi 0, %s21
    %s38 = sphi 0, %s22
    %s44 = sphi 0, %s46
    %s47 = sphi 0, %s44
    %s48 = sphi 0, %s47
    %s64 = sphi 0, %s48
    %s70 = sphi 0, %s72
    %s73 = sphi 0, %s70
    %s74 = sphi 0, %s73
    %s90 = sphi 0, %s74
  $region4: #{roberta_regressor_forward.14} parent=0 // loop_header_branch
    %11 = sbr.rel (%p9) target = $region8
  $region5: #{roberta_regressor_forward.14} parent=0 // loop_body
    %s13 = ssub.s32 %s8, 1
    %s14 = ssub.s32 %s8, 2
    %s15 = sadd.s32 %s8, 1
    %s16 = ssub.s32 %s8, %s15
    %p17 = scmp.eq.s32.totalorder %s16, 0
    %s19 = sadd.s32 %s18, 1
    %s20 = scalar_select %p17, %s18, %s19
    %p23 = pneg %p17
    %p24 = scmp.eq.s32.totalorder %s8, 1
    %p25 = por %p23, %p24
    %p26 = scmp.ne.s32.totalorder %s18, %s21
    %p27 = scmp.eq.s32.totalorder %s8, 0
    %p28 = por %p26, %p27
    %p29 = scmp.ne.s32.totalorder %s18, %s21
    %p30 = scmp.eq.s32.totalorder %s13, 1
    %p31 = por %p29, %p30
    %p32 = scmp.ne.s32.totalorder %s21, %s22
    %p33 = scmp.eq.s32.totalorder %s13, 0
    %p34 = por %p32, %p33
    %p35 = scmp.ne.s32.totalorder %s21, %s22
    %p36 = scmp.eq.s32.totalorder %s14, 1
    %p37 = por %p35, %p36
    %p39 = scmp.ne.s32.totalorder %s22, %s38
    %p40 = scmp.eq.s32.totalorder %s14, 0
    %p41 = por %p39, %p40
    %s42 = ssub.s32 %s8, %s15
    %p43 = scmp.eq.s32.totalorder %s42, 0
    %s45 = sadd.s32 %s44, 1
    %s46 = scalar_select %p43, %s44, %s45
    %p49 = pneg %p43
    %p50 = scmp.eq.s32.totalorder %s8, 1
    %p51 = por %p49, %p50
    %p52 = scmp.ne.s32.totalorder %s44, %s47
    %p53 = scmp.eq.s32.totalorder %s8, 0
    %p54 = por %p52, %p53
    %p55 = scmp.ne.s32.totalorder %s44, %s47
    %p56 = scmp.eq.s32.totalorder %s13, 1
    %p57 = por %p55, %p56
    %p58 = scmp.ne.s32.totalorder %s47, %s48
    %p59 = scmp.eq.s32.totalorder %s13, 0
    %p60 = por %p58, %p59
    %p61 = scmp.ne.s32.totalorder %s47, %s48
    %p62 = scmp.eq.s32.totalorder %s14, 1
    %p63 = por %p61, %p62
    %p65 = scmp.ne.s32.totalorder %s48, %s64
    %p66 = scmp.eq.s32.totalorder %s14, 0
    %p67 = por %p65, %p66
    %s68 = ssub.s32 %s8, %s15
    %p69 = scmp.eq.s32.totalorder %s68, 0
    %s71 = sadd.s32 %s70, 1
    %s72 = scalar_select %p69, %s70, %s71
    %p75 = pneg %p69
    %p76 = scmp.eq.s32.totalorder %s8, 1
    %p77 = por %p75, %p76
    %p78 = scmp.ne.s32.totalorder %s70, %s73
    %p79 = scmp.eq.s32.totalorder %s8, 0
    %p80 = por %p78, %p79
    %p81 = scmp.ne.s32.totalorder %s70, %s73
    %p82 = scmp.eq.s32.totalorder %s13, 1
    %p83 = por %p81, %p82
    %p84 = scmp.ne.s32.totalorder %s73, %s74
    %p85 = scmp.eq.s32.totalorder %s13, 0
    %p86 = por %p84, %p85
    %p87 = scmp.ne.s32.totalorder %s73, %s74
    %p88 = scmp.eq.s32.totalorder %s14, 1
    %p89 = por %p87, %p88
    %p91 = scmp.ne.s32.totalorder %s74, %s90
    %p92 = scmp.eq.s32.totalorder %s14, 0
    %p93 = por %p91, %p92
    %p94 = scmp.le.s32.totalorder 1, %s8
    %p95 = scmp.lt.s32.totalorder %s8, 3
    %p96 = pnand %p94, %p95
    %p97 = pneg %p96
    // Predicated region
    $region9: #{roberta_regressor_forward.14} parent=5 // pred_check
      _
    $region10: #{roberta_regressor_forward.14} parent=5 // pred_check_branch
      %99 = sbr.rel (%p96) target = $region12
    $region11: #{roberta_regressor_forward.14} parent=5 // pred_region
      %s100 = ssub.s32 %s8, 1
    $region12: #{roberta_regressor_forward.14} parent=5 // pred_fallthru
      _
    %p101 = scmp.lt.s32.totalorder %s8, 2
    // Predicated region
    $region13: #{roberta_regressor_forward.14} parent=5 // pred_check
      %p102 = pneg %p101
    $region14: #{roberta_regressor_forward.14} parent=5 // pred_check_branch
      %104 = sbr.rel (%p102) target = $region16
    $region15: #{roberta_regressor_forward.14} parent=5 // pred_region
      // Predicated region
      $region17: #{roberta_regressor_forward.14} parent=15 // pred_check
        %p105 = pneg %p28
      $region18: #{roberta_regressor_forward.14} parent=15 // pred_check_branch
        %107 = sbr.rel (%p105) target = $region20
      $region19: #{roberta_regressor_forward.14} parent=15 // pred_region
        %p108 = scmp.lt.s32.totalorder %s8, 1
        %s109 = scalar_select %p108, %s8, 1
        %s110 = smul.addr %s109, 4
        %s111 = scalar_lea.vmem %s0, %s110
      $region20: #{roberta_regressor_forward.14} parent=15 // pred_fallthru
        _
      // Predicated region
      $region21: #{roberta_regressor_forward.14} parent=15 // pred_check
        %p112 = pneg %p54
      $region22: #{roberta_regressor_forward.14} parent=15 // pred_check_branch
        %114 = sbr.rel (%p112) target = $region24
      $region23: #{roberta_regressor_forward.14} parent=15 // pred_region
        %p115 = scmp.lt.s32.totalorder %s8, 1
        %s116 = scalar_select %p115, %s8, 1
        %s117 = scalar_lea.vmem %s1, %s116
      $region24: #{roberta_regressor_forward.14} parent=15 // pred_fallthru
        _
    $region16: #{roberta_regressor_forward.14} parent=5 // pred_fallthru
      _
    %p118 = scmp.le.s32.totalorder 1, %s8
    %p119 = scmp.lt.s32.totalorder %s8, 3
    %p120 = pnand %p118, %p119
    %p121 = pneg %p120
    // Predicated region
    $region25: #{roberta_regressor_forward.14} parent=5 // pred_check
      _
    $region26: #{roberta_regressor_forward.14} parent=5 // pred_check_branch
      %123 = sbr.rel (%p120) target = $region28
    $region27: #{roberta_regressor_forward.14} parent=5 // pred_region
      %s124 = ssub.s32 %s8, 1
      %p125 = scmp.lt.s32.totalorder %s13, 1
      %s126 = scalar_select %p125, %s13, 1
      %s127 = smul.addr %s126, 4
      %s128 = scalar_lea.vmem %s0, %s127
      %p129 = pneg %p34
      %p130 = pneg %p31
      %p131 = scmp.lt.s32.totalorder %s13, 1
      %s132 = scalar_select %p131, %s13, 1
      %s133 = scalar_lea.vmem %s1, %s132
      %p134 = pneg %p60
      %p135 = pneg %p57
      %p136 = pneg %p86
      %p137 = pneg %p83
      %p138 = scmp.lt.s32.totalorder %s13, 1
      %s139 = scalar_select %p138, %s13, 1
      %s140 = smul.addr %s139, 4
      %s141 = scalar_lea.vmem %s2, %s140
      %p142 = scmp.lt.s32.totalorder %s13, 1
      %s143 = scalar_select %p142, %s13, 1
      %s144 = smul.addr %s143, 4
      %s145 = scalar_lea.vmem %s0, %s144
      %p146 = scmp.lt.s32.totalorder %s13, 1
      %s147 = scalar_select %p146, %s13, 1
      %s148 = scalar_lea.vmem %s1, %s147
      %p149 = scmp.lt.s32.totalorder %s13, 1
      %s150 = scalar_select %p149, %s13, 1
      %s151 = smul.addr %s150, 4
      %s152 = scalar_lea.vmem %s2, %s151
      %v154 = vld [vmem:[%s145] sm:$0xf]
      %v155 = vld [vmem:[%s148] sm:$0x1]
      %v156 = vunpack.c.l.bf16 %v154
      %v157 = vmul.f32 %v156, 0.35355338
      %v158 = vpack.c.bf16 %v157, %v157
      %v160 = vlaneseq
      %v161 = vshrl.u32 %v160, 7
      %v162 = vsub.s32 0, %v161
      %v163 = vrot.slane %v155, %v162
      %v166 = vunpack.c.l.b16 %v154
      %v167 = vpack.c.b16 %v166, %v166
      %168 = vrot.lane.b32.xlu0 %v167, 96
      %v169 = vpop.permute.xlu0 %168
      %vm170 = vcmask 64512
      %v172 = vsel %vm170, %v158, 0
      %v175 = vsel %vm170, %v169, 0
      %177 = vmatprep.subr.bf16.mxu0 0
      %178 = vmatpush1.bf16.xpose.msra.mxu0 0
      %179 = vmatprep.subr.bf16.mxu0 0
      %180 = vmatpush1.bf16.xpose.msra.mxu0 0
      %181 = vmatprep.subr.bf16.mxu0 0
      %182 = vmatpush1.bf16.xpose.msra.mxu0 0
      %183 = vmatprep.subr.bf16.mxu0 0
      %184 = vmatpush1.bf16.xpose.msra.mxu0 0
      %185 = vmatprep.subr.bf16.mxu0 0
      %186 = vmatpush1.bf16.xpose.msra.mxu0 0
      %187 = vmatprep.subr.bf16.mxu0 0
      %188 = vmatpush1.bf16.xpose.msra.mxu0 0
      %189 = vmatprep.subr.bf16.mxu0 0
      %190 = vmatpush1.bf16.xpose.msra.mxu0 0
      %191 = vmatprep.subr.bf16.mxu0 0
      %192 = vmatpush1.bf16.xpose.msra.mxu0 %v175
      %193 = vmatprep.subr.bf16.mxu0 0
      %194 = vmatpush2.bf16.xpose.msra.mxu0 0
      %195 = vmatprep.subr.bf16.mxu0 0
      %196 = vmatpush2.bf16.xpose.msra.mxu0 0
      %197 = vmatprep.subr.bf16.mxu0 0
      %198 = vmatpush2.bf16.xpose.msra.mxu0 0
      %199 = vmatprep.subr.bf16.mxu0 0
      %200 = vmatpush2.bf16.xpose.msra.mxu0 0
      %201 = vmatprep.subr.bf16.mxu0 0
      %202 = vmatpush2.bf16.xpose.msra.mxu0 0
      %203 = vmatprep.subr.bf16.mxu0 0
      %204 = vmatpush2.bf16.xpose.msra.mxu0 0
      %205 = vmatprep.subr.bf16.mxu0 0
      %206 = vmatpush2.bf16.xpose.msra.mxu0 0
      %207 = vmatprep.subr.bf16.mxu0 0
      %208 = vmatpush2.bf16.xpose.msra.mxu0 0
      %209 = vmatprep.mubr.bf16.mxu0 0
      %210 = vmatmul.mubr.bf16.gmra.mxu0 %v172
      %v211 = vpop.f32.mrf.mxu0
      %v212 = vadd.f32 %v163, %v211
      %v213 = vpop.f32.mrf.mxu0
      %v214 = vpop.f32.mrf.mxu0
      %v215 = vpop.f32.mrf.mxu0
      %216 = vdwg.mxu0
      %v217 = vsel %vm170, %v212, -inf
      %218 = vmax.xlane.f32.xlu0 %v217
      %v219 = vpop.xlane.xlu0 %218
      %v220 = vsub.f32 %v212, %v219
      %v221 = vmul.f32 %v220, 1.442695
      %v222 = vpow.pop %v221
      %v223 = vsel %vm170, %v222, 0.0
      %224 = vadd.xlane.f32.xlu0 %v223
      %v225 = vpop.xlane.xlu0 %224
      %v226 = vrcp.pop %v225
      %v227 = vmul.f32 %v222, %v226
      %v228 = vpack.c.bf16 %v227, %v227
      %229 = vrot.lane.b32.xlu0 %v167, 64
      %v230 = vpop.permute.xlu0 %229
      %v232 = vsel %vm170, %v228, 0
      %vm234 = vcmask 1043456
      %v236 = vsel %vm234, %v230, 0
      %238 = vmatprep.subr.bf16.mxu0 0
      %239 = vmatpush1.bf16.msra.mxu0 0
      %240 = vmatprep.subr.bf16.mxu0 0
      %241 = vmatpush1.bf16.msra.mxu0 0
      %242 = vmatprep.subr.bf16.mxu0 0
      %243 = vmatpush1.bf16.msra.mxu0 0
      %244 = vmatprep.subr.bf16.mxu0 0
      %245 = vmatpush1.bf16.msra.mxu0 0
      %246 = vmatprep.subr.bf16.mxu0 0
      %247 = vmatpush1.bf16.msra.mxu0 0
      %248 = vmatprep.subr.bf16.mxu0 0
      %249 = vmatpush1.bf16.msra.mxu0 0
      %250 = vmatprep.subr.bf16.mxu0 0
      %251 = vmatpush1.bf16.msra.mxu0 0
      %252 = vmatprep.subr.bf16.mxu0 0
      %253 = vmatpush1.bf16.msra.mxu0 %v236
      %254 = vmatprep.subr.bf16.mxu0 0
      %255 = vmatpush2.bf16.msra.mxu0 0
      %256 = vmatprep.subr.bf16.mxu0 0
      %257 = vmatpush2.bf16.msra.mxu0 0
      %258 = vmatprep.subr.bf16.mxu0 0
      %259 = vmatpush2.bf16.msra.mxu0 0
      %260 = vmatprep.subr.bf16.mxu0 0
      %261 = vmatpush2.bf16.msra.mxu0 0
      %262 = vmatprep.subr.bf16.mxu0 0
      %263 = vmatpush2.bf16.msra.mxu0 0
      %264 = vmatprep.subr.bf16.mxu0 0
      %265 = vmatpush2.bf16.msra.mxu0 0
      %266 = vmatprep.subr.bf16.mxu0 0
      %267 = vmatpush2.bf16.msra.mxu0 0
      %268 = vmatprep.subr.bf16.mxu0 0
      %269 = vmatpush2.bf16.msra.mxu0 0
      %270 = vmatprep.mubr.bf16.mxu0 0
      %271 = vmatmul.mubr.bf16.gmra.mxu0 %v232
      %v272 = vpop.f32.mrf.mxu0
      %v273 = vadd.f32 0.0, %v272
      %v274 = vpop.f32.mrf.mxu0
      %v275 = vpop.f32.mrf.mxu0
      %v276 = vpop.f32.mrf.mxu0
      %277 = vdwg.mxu0
      %v278 = vpack.c.bf16 %v273, %v273
      %vm279 = vcmask 60416
      %280 = vst.msk [vmem:[%s152] sm:$0xf] %vm279, %v278
      %282 = vrot.lane.b32.xlu0 %v158, 120
      %v283 = vpop.permute.xlu0 %282
      %284 = vrot.lane.b32.xlu0 %v167, 88
      %v285 = vpop.permute.xlu0 %284
      %v287 = vsel %vm170, %v283, 0
      %v290 = vsel %vm170, %v285, 0
      %292 = vmatprep.subr.bf16.mxu0 0
      %293 = vmatpush1.bf16.xpose.msra.mxu0 0
      %294 = vmatprep.subr.bf16.mxu0 0
      %295 = vmatpush1.bf16.xpose.msra.mxu0 0
      %296 = vmatprep.subr.bf16.mxu0 0
      %297 = vmatpush1.bf16.xpose.msra.mxu0 0
      %298 = vmatprep.subr.bf16.mxu0 0
      %299 = vmatpush1.bf16.xpose.msra.mxu0 0
      %300 = vmatprep.subr.bf16.mxu0 0
      %301 = vmatpush1.bf16.xpose.msra.mxu0 0
      %302 = vmatprep.subr.bf16.mxu0 0
      %303 = vmatpush1.bf16.xpose.msra.mxu0 0
      %304 = vmatprep.subr.bf16.mxu0 0
      %305 = vmatpush1.bf16.xpose.msra.mxu0 0
      %306 = vmatprep.subr.bf16.mxu0 0
      %307 = vmatpush1.bf16.xpose.msra.mxu0 %v290
      %308 = vmatprep.subr.bf16.mxu0 0
      %309 = vmatpush2.bf16.xpose.msra.mxu0 0
      %310 = vmatprep.subr.bf16.mxu0 0
      %311 = vmatpush2.bf16.xpose.msra.mxu0 0
      %312 = vmatprep.subr.bf16.mxu0 0
      %313 = vmatpush2.bf16.xpose.msra.mxu0 0
      %314 = vmatprep.subr.bf16.mxu0 0
      %315 = vmatpush2.bf16.xpose.msra.mxu0 0
      %316 = vmatprep.subr.bf16.mxu0 0
      %317 = vmatpush2.bf16.xpose.msra.mxu0 0
      %318 = vmatprep.subr.bf16.mxu0 0
      %319 = vmatpush2.bf16.xpose.msra.mxu0 0
      %320 = vmatprep.subr.bf16.mxu0 0
      %321 = vmatpush2.bf16.xpose.msra.mxu0 0
      %322 = vmatprep.subr.bf16.mxu0 0
      %323 = vmatpush2.bf16.xpose.msra.mxu0 0
      %324 = vmatprep.mubr.bf16.mxu0 0
      %325 = vmatmul.mubr.bf16.gmra.mxu0 %v287
      %v326 = vpop.f32.mrf.mxu0
      %v327 = vadd.f32 %v163, %v326
      %v328 = vpop.f32.mrf.mxu0
      %v329 = vpop.f32.mrf.mxu0
      %v330 = vpop.f32.mrf.mxu0
      %331 = vdwg.mxu0
      %v332 = vsel %vm170, %v327, -inf
      %333 = vmax.xlane.f32.xlu0 %v332
      %v334 = vpop.xlane.xlu0 %333
      %v335 = vsub.f32 %v327, %v334
      %v336 = vmul.f32 %v335, 1.442695
      %v337 = vpow.pop %v336
      %v338 = vsel %vm170, %v337, 0.0
      %339 = vadd.xlane.f32.xlu0 %v338
      %v340 = vpop.xlane.xlu0 %339
      %v341 = vrcp.pop %v340
      %v342 = vmul.f32 %v337, %v341
      %v343 = vpack.c.bf16 %v342, %v342
      %344 = vrot.lane.b32.xlu0 %v167, 56
      %v345 = vpop.permute.xlu0 %344
      %v347 = vsel %vm170, %v343, 0
      %v350 = vsel %vm234, %v345, 0
      %352 = vmatprep.subr.bf16.mxu0 0
      %353 = vmatpush1.bf16.msra.mxu0 0
      %354 = vmatprep.subr.bf16.mxu0 0
      %355 = vmatpush1.bf16.msra.mxu0 0
      %356 = vmatprep.subr.bf16.mxu0 0
      %357 = vmatpush1.bf16.msra.mxu0 0
      %358 = vmatprep.subr.bf16.mxu0 0
      %359 = vmatpush1.bf16.msra.mxu0 0
      %360 = vmatprep.subr.bf16.mxu0 0
      %361 = vmatpush1.bf16.msra.mxu0 0
      %362 = vmatprep.subr.bf16.mxu0 0
      %363 = vmatpush1.bf16.msra.mxu0 0
      %364 = vmatprep.subr.bf16.mxu0 0
      %365 = vmatpush1.bf16.msra.mxu0 0
      %366 = vmatprep.subr.bf16.mxu0 0
      %367 = vmatpush1.bf16.msra.mxu0 %v350
      %368 = vmatprep.subr.bf16.mxu0 0
      %369 = vmatpush2.bf16.msra.mxu0 0
      %370 = vmatprep.subr.bf16.mxu0 0
      %371 = vmatpush2.bf16.msra.mxu0 0
      %372 = vmatprep.subr.bf16.mxu0 0
      %373 = vmatpush2.bf16.msra.mxu0 0
      %374 = vmatprep.subr.bf16.mxu0 0
      %375 = vmatpush2.bf16.msra.mxu0 0
      %376 = vmatprep.subr.bf16.mxu0 0
      %377 = vmatpush2.bf16.msra.mxu0 0
      %378 = vmatprep.subr.bf16.mxu0 0
      %379 = vmatpush2.bf16.msra.mxu0 0
      %380 = vmatprep.subr.bf16.mxu0 0
      %381 = vmatpush2.bf16.msra.mxu0 0
      %382 = vmatprep.subr.bf16.mxu0 0
      %383 = vmatpush2.bf16.msra.mxu0 0
      %384 = vmatprep.mubr.bf16.mxu0 0
      %385 = vmatmul.mubr.bf16.gmra.mxu0 %v347
      %v386 = vpop.f32.mrf.mxu0
      %v387 = vadd.f32 0.0, %v386
      %v388 = vpop.f32.mrf.mxu0
      %v389 = vpop.f32.mrf.mxu0
      %v390 = vpop.f32.mrf.mxu0
      %391 = vdwg.mxu0
      %v392 = vpack.c.bf16 %v387, %v387
      %v394 = vunpack.c.l.b16 %v392
      %v395 = vpack.c.b16 %v394, %v394
      %396 = vrot.lane.b32.xlu0 %v395, 8
      %v397 = vpop.permute.xlu0 %396
      %vm399 = vcmask 126016
      %400 = vst.msk [vmem:[%s152] sm:$0xf] %vm399, %v397
      %401 = vrot.lane.b32.xlu0 %v158, 112
      %v402 = vpop.permute.xlu0 %401
      %403 = vrot.lane.b32.xlu0 %v167, 80
      %v404 = vpop.permute.xlu0 %403
      %v406 = vsel %vm170, %v402, 0
      %v409 = vsel %vm170, %v404, 0
      %411 = vmatprep.subr.bf16.mxu0 0
      %412 = vmatpush1.bf16.xpose.msra.mxu0 0
      %413 = vmatprep.subr.bf16.mxu0 0
      %414 = vmatpush1.bf16.xpose.msra.mxu0 0
      %415 = vmatprep.subr.bf16.mxu0 0
      %416 = vmatpush1.bf16.xpose.msra.mxu0 0
      %417 = vmatprep.subr.bf16.mxu0 0
      %418 = vmatpush1.bf16.xpose.msra.mxu0 0
      %419 = vmatprep.subr.bf16.mxu0 0
      %420 = vmatpush1.bf16.xpose.msra.mxu0 0
      %421 = vmatprep.subr.bf16.mxu0 0
      %422 = vmatpush1.bf16.xpose.msra.mxu0 0
      %423 = vmatprep.subr.bf16.mxu0 0
      %424 = vmatpush1.bf16.xpose.msra.mxu0 0
      %425 = vmatprep.subr.bf16.mxu0 0
      %426 = vmatpush1.bf16.xpose.msra.mxu0 %v409
      %427 = vmatprep.subr.bf16.mxu0 0
      %428 = vmatpush2.bf16.xpose.msra.mxu0 0
      %429 = vmatprep.subr.bf16.mxu0 0
      %430 = vmatpush2.bf16.xpose.msra.mxu0 0
      %431 = vmatprep.subr.bf16.mxu0 0
      %432 = vmatpush2.bf16.xpose.msra.mxu0 0
      %433 = vmatprep.subr.bf16.mxu0 0
      %434 = vmatpush2.bf16.xpose.msra.mxu0 0
      %435 = vmatprep.subr.bf16.mxu0 0
      %436 = vmatpush2.bf16.xpose.msra.mxu0 0
      %437 = vmatprep.subr.bf16.mxu0 0
      %438 = vmatpush2.bf16.xpose.msra.mxu0 0
      %439 = vmatprep.subr.bf16.mxu0 0
      %440 = vmatpush2.bf16.xpose.msra.mxu0 0
      %441 = vmatprep.subr.bf16.mxu0 0
      %442 = vmatpush2.bf16.xpose.msra.mxu0 0
      %443 = vmatprep.mubr.bf16.mxu0 0
      %444 = vmatmul.mubr.bf16.gmra.mxu0 %v406
      %v445 = vpop.f32.mrf.mxu0
      %v446 = vadd.f32 %v163, %v445
      %v447 = vpop.f32.mrf.mxu0
      %v448 = vpop.f32.mrf.mxu0
      %v449 = vpop.f32.mrf.mxu0
      %450 = vdwg.mxu0
      %v451 = vsel %vm170, %v446, -inf
      %452 = vmax.xlane.f32.xlu0 %v451
      %v453 = vpop.xlane.xlu0 %452
      %v454 = vsub.f32 %v446, %v453
      %v455 = vmul.f32 %v454, 1.442695
      %v456 = vpow.pop %v455
      %v457 = vsel %vm170, %v456, 0.0
      %458 = vadd.xlane.f32.xlu0 %v457
      %v459 = vpop.xlane.xlu0 %458
      %v460 = vrcp.pop %v459
      %v461 = vmul.f32 %v456, %v460
      %v462 = vpack.c.bf16 %v461, %v461
      %463 = vrot.lane.b32.xlu0 %v167, 48
      %v464 = vpop.permute.xlu0 %463
      %v466 = vsel %vm170, %v462, 0
      %v469 = vsel %vm234, %v464, 0
      %471 = vmatprep.subr.bf16.mxu0 0
      %472 = vmatpush1.bf16.msra.mxu0 0
      %473 = vmatprep.subr.bf16.mxu0 0
      %474 = vmatpush1.bf16.msra.mxu0 0
      %475 = vmatprep.subr.bf16.mxu0 0
      %476 = vmatpush1.bf16.msra.mxu0 0
      %477 = vmatprep.subr.bf16.mxu0 0
      %478 = vmatpush1.bf16.msra.mxu0 0
      %479 = vmatprep.subr.bf16.mxu0 0
      %480 = vmatpush1.bf16.msra.mxu0 0
      %481 = vmatprep.subr.bf16.mxu0 0
      %482 = vmatpush1.bf16.msra.mxu0 0
      %483 = vmatprep.subr.bf16.mxu0 0
      %484 = vmatpush1.bf16.msra.mxu0 0
      %485 = vmatprep.subr.bf16.mxu0 0
      %486 = vmatpush1.bf16.msra.mxu0 %v469
      %487 = vmatprep.subr.bf16.mxu0 0
      %488 = vmatpush2.bf16.msra.mxu0 0
      %489 = vmatprep.subr.bf16.mxu0 0
      %490 = vmatpush2.bf16.msra.mxu0 0
      %491 = vmatprep.subr.bf16.mxu0 0
      %492 = vmatpush2.bf16.msra.mxu0 0
      %493 = vmatprep.subr.bf16.mxu0 0
      %494 = vmatpush2.bf16.msra.mxu0 0
      %495 = vmatprep.subr.bf16.mxu0 0
      %496 = vmatpush2.bf16.msra.mxu0 0
      %497 = vmatprep.subr.bf16.mxu0 0
      %498 = vmatpush2.bf16.msra.mxu0 0
      %499 = vmatprep.subr.bf16.mxu0 0
      %500 = vmatpush2.bf16.msra.mxu0 0
      %501 = vmatprep.subr.bf16.mxu0 0
      %502 = vmatpush2.bf16.msra.mxu0 0
      %503 = vmatprep.mubr.bf16.mxu0 0
      %504 = vmatmul.mubr.bf16.gmra.mxu0 %v466
      %v505 = vpop.f32.mrf.mxu0
      %v506 = vadd.f32 0.0, %v505
      %v507 = vpop.f32.mrf.mxu0
      %v508 = vpop.f32.mrf.mxu0
      %v509 = vpop.f32.mrf.mxu0
      %510 = vdwg.mxu0
      %v511 = vpack.c.bf16 %v506, %v506
      %v513 = vunpack.c.l.b16 %v511
      %v514 = vpack.c.b16 %v513, %v513
      %515 = vrot.lane.b32.xlu0 %v514, 16
      %v516 = vpop.permute.xlu0 %515
      %vm518 = vcmask 191616
      %519 = vst.msk [vmem:[%s152] sm:$0xf] %vm518, %v516
      %520 = vrot.lane.b32.xlu0 %v158, 104
      %v521 = vpop.permute.xlu0 %520
      %522 = vrot.lane.b32.xlu0 %v167, 72
      %v523 = vpop.permute.xlu0 %522
      %v525 = vsel %vm170, %v521, 0
      %v528 = vsel %vm170, %v523, 0
      %530 = vmatprep.subr.bf16.mxu0 0
      %531 = vmatpush1.bf16.xpose.msra.mxu0 0
      %532 = vmatprep.subr.bf16.mxu0 0
      %533 = vmatpush1.bf16.xpose.msra.mxu0 0
      %534 = vmatprep.subr.bf16.mxu0 0
      %535 = vmatpush1.bf16.xpose.msra.mxu0 0
      %536 = vmatprep.subr.bf16.mxu0 0
      %537 = vmatpush1.bf16.xpose.msra.mxu0 0
      %538 = vmatprep.subr.bf16.mxu0 0
      %539 = vmatpush1.bf16.xpose.msra.mxu0 0
      %540 = vmatprep.subr.bf16.mxu0 0
      %541 = vmatpush1.bf16.xpose.msra.mxu0 0
      %542 = vmatprep.subr.bf16.mxu0 0
      %543 = vmatpush1.bf16.xpose.msra.mxu0 0
      %544 = vmatprep.subr.bf16.mxu0 0
      %545 = vmatpush1.bf16.xpose.msra.mxu0 %v528
      %546 = vmatprep.subr.bf16.mxu0 0
      %547 = vmatpush2.bf16.xpose.msra.mxu0 0
      %548 = vmatprep.subr.bf16.mxu0 0
      %549 = vmatpush2.bf16.xpose.msra.mxu0 0
      %550 = vmatprep.subr.bf16.mxu0 0
      %551 = vmatpush2.bf16.xpose.msra.mxu0 0
      %552 = vmatprep.subr.bf16.mxu0 0
      %553 = vmatpush2.bf16.xpose.msra.mxu0 0
      %554 = vmatprep.subr.bf16.mxu0 0
      %555 = vmatpush2.bf16.xpose.msra.mxu0 0
      %556 = vmatprep.subr.bf16.mxu0 0
      %557 = vmatpush2.bf16.xpose.msra.mxu0 0
      %558 = vmatprep.subr.bf16.mxu0 0
      %559 = vmatpush2.bf16.xpose.msra.mxu0 0
      %560 = vmatprep.subr.bf16.mxu0 0
      %561 = vmatpush2.bf16.xpose.msra.mxu0 0
      %562 = vmatprep.mubr.bf16.mxu0 0
      %563 = vmatmul.mubr.bf16.gmra.mxu0 %v525
      %v564 = vpop.f32.mrf.mxu0
      %v565 = vadd.f32 %v163, %v564
      %v566 = vpop.f32.mrf.mxu0
      %v567 = vpop.f32.mrf.mxu0
      %v568 = vpop.f32.mrf.mxu0
      %569 = vdwg.mxu0
      %v570 = vsel %vm170, %v565, -inf
      %571 = vmax.xlane.f32.xlu0 %v570
      %v572 = vpop.xlane.xlu0 %571
      %v573 = vsub.f32 %v565, %v572
      %v574 = vmul.f32 %v573, 1.442695
      %v575 = vpow.pop %v574
      %v576 = vsel %vm170, %v575, 0.0
      %577 = vadd.xlane.f32.xlu0 %v576
      %v578 = vpop.xlane.xlu0 %577
      %v579 = vrcp.pop %v578
      %v580 = vmul.f32 %v575, %v579
      %v581 = vpack.c.bf16 %v580, %v580
      %582 = vrot.lane.b32.xlu0 %v167, 40
      %v583 = vpop.permute.xlu0 %582
      %v585 = vsel %vm170, %v581, 0
      %v588 = vsel %vm234, %v583, 0
      %590 = vmatprep.subr.bf16.mxu0 0
      %591 = vmatpush1.bf16.msra.mxu0 0
      %592 = vmatprep.subr.bf16.mxu0 0
      %593 = vmatpush1.bf16.msra.mxu0 0
      %594 = vmatprep.subr.bf16.mxu0 0
      %595 = vmatpush1.bf16.msra.mxu0 0
      %596 = vmatprep.subr.bf16.mxu0 0
      %597 = vmatpush1.bf16.msra.mxu0 0
      %598 = vmatprep.subr.bf16.mxu0 0
      %599 = vmatpush1.bf16.msra.mxu0 0
      %600 = vmatprep.subr.bf16.mxu0 0
      %601 = vmatpush1.bf16.msra.mxu0 0
      %602 = vmatprep.subr.bf16.mxu0 0
      %603 = vmatpush1.bf16.msra.mxu0 0
      %604 = vmatprep.subr.bf16.mxu0 0
      %605 = vmatpush1.bf16.msra.mxu0 %v588
      %606 = vmatprep.subr.bf16.mxu0 0
      %607 = vmatpush2.bf16.msra.mxu0 0
      %608 = vmatprep.subr.bf16.mxu0 0
      %609 = vmatpush2.bf16.msra.mxu0 0
      %610 = vmatprep.subr.bf16.mxu0 0
      %611 = vmatpush2.bf16.msra.mxu0 0
      %612 = vmatprep.subr.bf16.mxu0 0
      %613 = vmatpush2.bf16.msra.mxu0 0
      %614 = vmatprep.subr.bf16.mxu0 0
      %615 = vmatpush2.bf16.msra.mxu0 0
      %616 = vmatprep.subr.bf16.mxu0 0
      %617 = vmatpush2.bf16.msra.mxu0 0
      %618 = vmatprep.subr.bf16.mxu0 0
      %619 = vmatpush2.bf16.msra.mxu0 0
      %620 = vmatprep.subr.bf16.mxu0 0
      %621 = vmatpush2.bf16.msra.mxu0 0
      %622 = vmatprep.mubr.bf16.mxu0 0
      %623 = vmatmul.mubr.bf16.gmra.mxu0 %v585
      %v624 = vpop.f32.mrf.mxu0
      %v625 = vadd.f32 0.0, %v624
      %v626 = vpop.f32.mrf.mxu0
      %v627 = vpop.f32.mrf.mxu0
      %v628 = vpop.f32.mrf.mxu0
      %629 = vdwg.mxu0
      %v630 = vpack.c.bf16 %v625, %v625
      %v632 = vunpack.c.l.b16 %v630
      %v633 = vpack.c.b16 %v632, %v632
      %634 = vrot.lane.b32.xlu0 %v633, 24
      %v635 = vpop.permute.xlu0 %634
      %vm637 = vcmask 257216
      %638 = vst.msk [vmem:[%s152] sm:$0xf] %vm637, %v635
      %p639 = scmp.lt.s32.totalorder %s13, 1
      %s640 = scalar_select %p639, %s13, 1
      %s641 = smul.addr %s640, 4
      %s642 = scalar_lea.vmem %s2, %s641
      // Predicated region
      $region29: #{roberta_regressor_forward.14} parent=27 // pred_check
        %p643 = pneg %p83
      $region30: #{roberta_regressor_forward.14} parent=27 // pred_check_branch
        %645 = sbr.rel (%p643) target = $region32
      $region31: #{roberta_regressor_forward.14} parent=27 // pred_region
        _
      $region32: #{roberta_regressor_forward.14} parent=27 // pred_fallthru
        _
    $region28: #{roberta_regressor_forward.14} parent=5 // pred_fallthru
      _
    %p646 = scmp.le.s32.totalorder 2, %s8
    // Predicated region
    $region33: #{roberta_regressor_forward.14} parent=5 // pred_check
      %p647 = pneg %p646
    $region34: #{roberta_regressor_forward.14} parent=5 // pred_check_branch
      %649 = sbr.rel (%p647) target = $region36
    $region35: #{roberta_regressor_forward.14} parent=5 // pred_region
      %s650 = ssub.s32 %s8, 2
      // Predicated region
      $region37: #{roberta_regressor_forward.14} parent=35 // pred_check
        %p651 = pneg %p89
      $region38: #{roberta_regressor_forward.14} parent=35 // pred_check_branch
        %653 = sbr.rel (%p651) target = $region40
      $region39: #{roberta_regressor_forward.14} parent=35 // pred_region
        %p654 = scmp.lt.s32.totalorder %s14, 1
        %s655 = scalar_select %p654, %s14, 1
        %s656 = smul.addr %s655, 4
        %s657 = scalar_lea.vmem %s2, %s656
      $region40: #{roberta_regressor_forward.14} parent=35 // pred_fallthru
        _
    $region36: #{roberta_regressor_forward.14} parent=5 // pred_fallthru
      _
  $region6: #{roberta_regressor_forward.14} parent=0 // loop_footer
    %s12 = sadd.s32 1, %s8
  $region7: #{roberta_regressor_forward.14} parent=0 // loop_footer_branch
    %7 = sbr.rel target = $region3
  $region8: #{roberta_regressor_forward.14} parent=0 // loop_exit
    _

// kernel: roberta_regressor_forward.16
$region0: #{roberta_regressor_forward.16}
  #allocation0 [shape = 'u32[]', space=smem, size = 0x4, offset = 0x4, fixed_abs, tag = 'smem constant byte address 0x4 - core index']
  #allocation1 [shape = 'u32[144,128]{1,0:T(1,128)}', space=vmem, size = 0x12000, scoped, tag = 'internal scratch']
  #allocation2 [shape = 'f32[16,64]{1,0:T(8,128)}', space=vmem, size = 0x2000, scoped, tag = 'scratch operand']
  %s0 = inlined_call_operand.vmem [shape: bf16[16,32], index: 0, kind: input, shape index: {}]
  %s1 = inlined_call_operand.vmem [shape: bf16[32,64], index: 1, kind: input, shape index: {}]
  %s2 = inlined_call_operand.vmem [shape: f32[1,64], index: 2, kind: input, shape index: {}]
  %s3 = inlined_call_operand.vmem [shape: bf16[16,64], index: 3, kind: output, shape index: {}]
  %s4 = sld [smem:[#allocation0]]
  $region30: #{roberta_regressor_forward.16} parent=0
    _
  %s6 = ssub.s32 1, %s4
  %s7 = scalar_select 0, %s6, %s4
  // Predicated region
  $region2: #{roberta_regressor_forward.16} parent=0 // pred_check
    _
  $region3: #{roberta_regressor_forward.16} parent=0 // pred_check_branch
    %9 = sbr.rel (0) target = $region5
  $region4: #{roberta_regressor_forward.16} parent=0 // pred_region
    _
  $region5: #{roberta_regressor_forward.16} parent=0 // pred_fallthru
    _
  // Predicated region
  $region6: #{roberta_regressor_forward.16} parent=0 // pred_check
    _
  $region7: #{roberta_regressor_forward.16} parent=0 // pred_check_branch
    %11 = sbr.rel (0) target = $region9
  $region8: #{roberta_regressor_forward.16} parent=0 // pred_region
    _
  $region9: #{roberta_regressor_forward.16} parent=0 // pred_fallthru
    _
  // Predicated region
  $region10: #{roberta_regressor_forward.16} parent=0 // pred_check
    _
  $region11: #{roberta_regressor_forward.16} parent=0 // pred_check_branch
    %13 = sbr.rel (0) target = $region13
  $region12: #{roberta_regressor_forward.16} parent=0 // pred_region
    _
  $region13: #{roberta_regressor_forward.16} parent=0 // pred_fallthru
    _
  %p15 = scmp.eq.s32.totalorder 0, 0
  // Predicated region
  $region14: #{roberta_regressor_forward.16} parent=0 // pred_check
    %p16 = pneg %p15
  $region15: #{roberta_regressor_forward.16} parent=0 // pred_check_branch
    %18 = sbr.rel (%p16) target = $region17
  $region16: #{roberta_regressor_forward.16} parent=0 // pred_region
    %vm19 = vcmask 523264
    %20 = vst.msk [vmem:[#allocation2] sm:$0xff] %vm19, 0.0
    %21 = vst.msk [vmem:[#allocation2 + $0x8] sm:$0xff] %vm19, 0.0
  $region17: #{roberta_regressor_forward.16} parent=0 // pred_fallthru
    _
  %v22 = vld [vmem:[#allocation2] sm:$0xff]
  %v23 = vld [vmem:[#allocation2 + $0x8] sm:$0xff]
  %v24 = vld [vmem:[%s0] sm:$0xf]
  %v25 = vld [vmem:[%s0 + $0x4] sm:$0xf]
  %v26 = vld [vmem:[%s1] sm:$0xf]
  %v27 = vld [vmem:[%s1 + $0x4] sm:$0xf]
  %v28 = vld [vmem:[%s1 + $0x8] sm:$0xf]
  %v29 = vld [vmem:[%s1 + $0xc] sm:$0xf]
  %v32 = vunpack.c.l.b16 %v24
  %v33 = vunpack.c.l.b16 %v25
  %v34 = vpack.c.b16 %v33, %v32
  %v39 = vunpack.c.l.b16 %v26
  %v40 = vunpack.c.l.b16 %v27
  %v41 = vunpack.c.l.b16 %v28
  %v42 = vunpack.c.l.b16 %v29
  %v43 = vpack.c.b16 %v40, %v39
  %v44 = vpack.c.b16 %v42, %v41
  %vm47 = vcmask 261120
  %v49 = vsel %vm47, %v34, 0
  %51 = vmatprep.subr.bf16.mxu0 0
  %52 = vmatpush1.bf16.msra.mxu0 0
  %53 = vmatprep.subr.bf16.mxu0 0
  %54 = vmatpush1.bf16.msra.mxu0 0
  %55 = vmatprep.subr.bf16.mxu0 0
  %56 = vmatpush1.bf16.msra.mxu0 0
  %57 = vmatprep.subr.bf16.mxu0 0
  %58 = vmatpush1.bf16.msra.mxu0 0
  %59 = vmatprep.subr.bf16.mxu0 0
  %60 = vmatpush1.bf16.msra.mxu0 0
  %61 = vmatprep.subr.bf16.mxu0 0
  %62 = vmatpush1.bf16.msra.mxu0 0
  %63 = vmatprep.subr.bf16.mxu0 0
  %64 = vmatpush1.bf16.msra.mxu0 %v44
  %65 = vmatprep.subr.bf16.mxu0 0
  %66 = vmatpush1.bf16.msra.mxu0 %v43
  %67 = vmatprep.subr.bf16.mxu0 0
  %68 = vmatpush2.bf16.msra.mxu0 0
  %69 = vmatprep.subr.bf16.mxu0 0
  %70 = vmatpush2.bf16.msra.mxu0 0
  %71 = vmatprep.subr.bf16.mxu0 0
  %72 = vmatpush2.bf16.msra.mxu0 0
  %73 = vmatprep.subr.bf16.mxu0 0
  %74 = vmatpush2.bf16.msra.mxu0 0
  %75 = vmatprep.subr.bf16.mxu0 0
  %76 = vmatpush2.bf16.msra.mxu0 0
  %77 = vmatprep.subr.bf16.mxu0 0
  %78 = vmatpush2.bf16.msra.mxu0 0
  %79 = vmatprep.subr.bf16.mxu0 0
  %80 = vmatpush2.bf16.msra.mxu0 0
  %81 = vmatprep.subr.bf16.mxu0 0
  %82 = vmatpush2.bf16.msra.mxu0 0
  %83 = vmatprep.mubr.bf16.mxu0 0
  %84 = vmatmul.mubr.bf16.gmra.mxu0 %v49
  %v85 = vpop.f32.mrf.mxu0
  %v86 = vadd.f32 0.0, %v85
  %v87 = vpop.f32.mrf.mxu0
  %v88 = vpop.f32.mrf.mxu0
  %v89 = vadd.f32 0.0, %v88
  %v90 = vpop.f32.mrf.mxu0
  %91 = vdwg.mxu0
  %v92 = vadd.f32 %v22, %v86
  %v93 = vadd.f32 %v23, %v89
  %vm94 = vcmask 523264
  %95 = vst.msk [vmem:[#allocation2] sm:$0xff] %vm94, %v92
  %96 = vst.msk [vmem:[#allocation2 + $0x8] sm:$0xff] %vm94, %v93
  // Predicated region
  $region18: #{roberta_regressor_forward.16} parent=0 // pred_check
    %p97 = pneg %p15
  $region19: #{roberta_regressor_forward.16} parent=0 // pred_check_branch
    %99 = sbr.rel (%p97) target = $region21
  $region20: #{roberta_regressor_forward.16} parent=0 // pred_region
    %v100 = vld [vmem:[#allocation2] sm:$0xff]
    %v101 = vld [vmem:[#allocation2 + $0x8] sm:$0xff]
    %v102 = vld [vmem:[%s2] sm:$0x1]
    %v104 = vlaneseq
    %v105 = vshrl.u32 %v104, 7
    %v106 = vsub.s32 0, %v105
    %v107 = vrot.slane %v102, %v106
    %v109 = vadd.f32 %v100, %v107
    %v110 = vadd.f32 %v101, %v107
    %v111 = vmul.f32 %v109, 0.5
    %v112 = vmul.f32 %v110, 0.5
    %v113 = vmul.f32 %v109, 0.044715
    %v114 = vmul.f32 %v110, 0.044715
    %v115 = vmul.f32 %v113, %v109
    %v116 = vmul.f32 %v114, %v110
    %v117 = vmul.f32 %v115, %v109
    %v118 = vmul.f32 %v116, %v110
    %v119 = vadd.f32 %v109, %v117
    %v120 = vadd.f32 %v110, %v118
    %v121 = vmul.f32 %v119, 0.7978846
    %v122 = vmul.f32 %v120, 0.7978846
    %v123 = vtanh.pop %v121
    %v124 = vtanh.pop %v122
    %v125 = vadd.f32 %v123, 1.0
    %v126 = vadd.f32 %v124, 1.0
    %v127 = vmul.f32 %v111, %v125
    %v128 = vmul.f32 %v112, %v126
    %v129 = vpack.c.bf16 %v128, %v127
    %v131 = vunpack.c.l.b16 %v129
    %v132 = vunpack.c.h.b16 %v129
    %v133 = vpack.c.b16 %v131, %v131
    %v134 = vpack.c.b16 %v132, %v132
    %vm137 = vcmask 519168
    %138 = vst.msk [vmem:[%s3] sm:$0xf] %vm137, %v133
    %139 = vst.msk [vmem:[%s3 + $0x4] sm:$0xf] %vm137, %v134
  $region21: #{roberta_regressor_forward.16} parent=0 // pred_fallthru
    _
  // Predicated region
  $region22: #{roberta_regressor_forward.16} parent=0 // pred_check
    _
  $region23: #{roberta_regressor_forward.16} parent=0 // pred_check_branch
    %141 = sbr.rel (0) target = $region25
  $region24: #{roberta_regressor_forward.16} parent=0 // pred_region
    _
  $region25: #{roberta_regressor_forward.16} parent=0 // pred_fallthru
    _
  // Predicated region
  $region26: #{roberta_regressor_forward.16} parent=0 // pred_check
    _
  $region27: #{roberta_regressor_forward.16} parent=0 // pred_check_branch
    %143 = sbr.rel (0) target = $region29
  $region28: #{roberta_regressor_forward.16} parent=0 // pred_region
    _
  $region29: #{roberta_regressor_forward.16} parent=0 // pred_fallthru
    _

// kernel: roberta_regressor_forward.17
$region0: #{roberta_regressor_forward.17}
  #allocation0 [shape = 'u32[]', space=smem, size = 0x4, offset = 0x4, fixed_abs, tag = 'smem constant byte address 0x4 - core index']
  #allocation1 [shape = 'u32[144,128]{1,0:T(1,128)}', space=vmem, size = 0x12000, scoped, tag = 'internal scratch']
  #allocation2 [shape = 'f32[16,32]{1,0:T(8,128)}', space=vmem, size = 0x2000, scoped, tag = 'scratch operand']
  %s0 = inlined_call_operand.vmem [shape: bf16[16,64], index: 0, kind: input, shape index: {}]
  %s1 = inlined_call_operand.vmem [shape: bf16[64,32], index: 1, kind: input, shape index: {}]
  %s2 = inlined_call_operand.vmem [shape: f32[1,32], index: 2, kind: input, shape index: {}]
  %s3 = inlined_call_operand.vmem [shape: bf16[16,32], index: 3, kind: input, shape index: {}]
  %s4 = inlined_call_operand.vmem [shape: f32[1,32], index: 4, kind: input, shape index: {}]
  %s5 = inlined_call_operand.vmem [shape: f32[1,32], index: 5, kind: input, shape index: {}]
  %s6 = inlined_call_operand.vmem [shape: bf16[16,32], index: 6, kind: output, shape index: {}]
  %s7 = sld [smem:[#allocation0]]
  $region42: #{roberta_regressor_forward.17} parent=0
    _
  %s9 = ssub.s32 1, %s7
  %s10 = scalar_select 0, %s9, %s7
  // Predicated region
  $region2: #{roberta_regressor_forward.17} parent=0 // pred_check
    _
  $region3: #{roberta_regressor_forward.17} parent=0 // pred_check_branch
    %12 = sbr.rel (0) target = $region5
  $region4: #{roberta_regressor_forward.17} parent=0 // pred_region
    _
  $region5: #{roberta_regressor_forward.17} parent=0 // pred_fallthru
    _
  // Predicated region
  $region6: #{roberta_regressor_forward.17} parent=0 // pred_check
    _
  $region7: #{roberta_regressor_forward.17} parent=0 // pred_check_branch
    %14 = sbr.rel (0) target = $region9
  $region8: #{roberta_regressor_forward.17} parent=0 // pred_region
    _
  $region9: #{roberta_regressor_forward.17} parent=0 // pred_fallthru
    _
  // Predicated region
  $region10: #{roberta_regressor_forward.17} parent=0 // pred_check
    _
  $region11: #{roberta_regressor_forward.17} parent=0 // pred_check_branch
    %16 = sbr.rel (0) target = $region13
  $region12: #{roberta_regressor_forward.17} parent=0 // pred_region
    _
  $region13: #{roberta_regressor_forward.17} parent=0 // pred_fallthru
    _
  // Predicated region
  $region14: #{roberta_regressor_forward.17} parent=0 // pred_check
    _
  $region15: #{roberta_regressor_forward.17} parent=0 // pred_check_branch
    %18 = sbr.rel (0) target = $region17
  $region16: #{roberta_regressor_forward.17} parent=0 // pred_region
    _
  $region17: #{roberta_regressor_forward.17} parent=0 // pred_fallthru
    _
  // Predicated region
  $region18: #{roberta_regressor_forward.17} parent=0 // pred_check
    _
  $region19: #{roberta_regressor_forward.17} parent=0 // pred_check_branch
    %20 = sbr.rel (0) target = $region21
  $region20: #{roberta_regressor_forward.17} parent=0 // pred_region
    _
  $region21: #{roberta_regressor_forward.17} parent=0 // pred_fallthru
    _
  // Predicated region
  $region22: #{roberta_regressor_forward.17} parent=0 // pred_check
    _
  $region23: #{roberta_regressor_forward.17} parent=0 // pred_check_branch
    %22 = sbr.rel (0) target = $region25
  $region24: #{roberta_regressor_forward.17} parent=0 // pred_region
    _
  $region25: #{roberta_regressor_forward.17} parent=0 // pred_fallthru
    _
  %p24 = scmp.eq.s32.totalorder 0, 0
  // Predicated region
  $region26: #{roberta_regressor_forward.17} parent=0 // pred_check
    %p25 = pneg %p24
  $region27: #{roberta_regressor_forward.17} parent=0 // pred_check_branch
    %27 = sbr.rel (%p25) target = $region29
  $region28: #{roberta_regressor_forward.17} parent=0 // pred_region
    %vm28 = vcmask 261120
    %29 = vst.msk [vmem:[#allocation2] sm:$0xff] %vm28, 0.0
    %30 = vst.msk [vmem:[#allocation2 + $0x8] sm:$0xff] %vm28, 0.0
  $region29: #{roberta_regressor_forward.17} parent=0 // pred_fallthru
    _
  %v31 = vld [vmem:[#allocation2] sm:$0xff]
  %v32 = vld [vmem:[#allocation2 + $0x8] sm:$0xff]
  %v33 = vld [vmem:[%s0] sm:$0xf]
  %v34 = vld [vmem:[%s0 + $0x4] sm:$0xf]
  %v35 = vld [vmem:[%s1] sm:$0xf]
  %v36 = vld [vmem:[%s1 + $0x4] sm:$0xf]
  %v37 = vld [vmem:[%s1 + $0x8] sm:$0xf]
  %v38 = vld [vmem:[%s1 + $0xc] sm:$0xf]
  %v39 = vld [vmem:[%s1 + $0x10] sm:$0xf]
  %v40 = vld [vmem:[%s1 + $0x14] sm:$0xf]
  %v41 = vld [vmem:[%s1 + $0x18] sm:$0xf]
  %v42 = vld [vmem:[%s1 + $0x1c] sm:$0xf]
  %v45 = vunpack.c.l.b16 %v33
  %v46 = vunpack.c.l.b16 %v34
  %v47 = vpack.c.b16 %v46, %v45
  %v56 = vunpack.c.l.b16 %v35
  %v57 = vunpack.c.l.b16 %v36
  %v58 = vunpack.c.l.b16 %v37
  %v59 = vunpack.c.l.b16 %v38
  %v60 = vunpack.c.l.b16 %v39
  %v61 = vunpack.c.l.b16 %v40
  %v62 = vunpack.c.l.b16 %v41
  %v63 = vunpack.c.l.b16 %v42
  %v64 = vpack.c.b16 %v57, %v56
  %v65 = vpack.c.b16 %v59, %v58
  %v66 = vpack.c.b16 %v61, %v60
  %v67 = vpack.c.b16 %v63, %v62
  %vm72 = vcmask 523264
  %v74 = vsel %vm72, %v47, 0
  %76 = vmatprep.subr.bf16.mxu0 0
  %77 = vmatpush1.bf16.msra.mxu0 0
  %78 = vmatprep.subr.bf16.mxu0 0
  %79 = vmatpush1.bf16.msra.mxu0 0
  %80 = vmatprep.subr.bf16.mxu0 0
  %81 = vmatpush1.bf16.msra.mxu0 0
  %82 = vmatprep.subr.bf16.mxu0 0
  %83 = vmatpush1.bf16.msra.mxu0 0
  %84 = vmatprep.subr.bf16.mxu0 0
  %85 = vmatpush1.bf16.msra.mxu0 %v67
  %86 = vmatprep.subr.bf16.mxu0 0
  %87 = vmatpush1.bf16.msra.mxu0 %v66
  %88 = vmatprep.subr.bf16.mxu0 0
  %89 = vmatpush1.bf16.msra.mxu0 %v65
  %90 = vmatprep.subr.bf16.mxu0 0
  %91 = vmatpush1.bf16.msra.mxu0 %v64
  %92 = vmatprep.subr.bf16.mxu0 0
  %93 = vmatpush2.bf16.msra.mxu0 0
  %94 = vmatprep.subr.bf16.mxu0 0
  %95 = vmatpush2.bf16.msra.mxu0 0
  %96 = vmatprep.subr.bf16.mxu0 0
  %97 = vmatpush2.bf16.msra.mxu0 0
  %98 = vmatprep.subr.bf16.mxu0 0
  %99 = vmatpush2.bf16.msra.mxu0 0
  %100 = vmatprep.subr.bf16.mxu0 0
  %101 = vmatpush2.bf16.msra.mxu0 0
  %102 = vmatprep.subr.bf16.mxu0 0
  %103 = vmatpush2.bf16.msra.mxu0 0
  %104 = vmatprep.subr.bf16.mxu0 0
  %105 = vmatpush2.bf16.msra.mxu0 0
  %106 = vmatprep.subr.bf16.mxu0 0
  %107 = vmatpush2.bf16.msra.mxu0 0
  %108 = vmatprep.mubr.bf16.mxu0 0
  %109 = vmatmul.mubr.bf16.gmra.mxu0 %v74
  %v110 = vpop.f32.mrf.mxu0
  %v111 = vadd.f32 0.0, %v110
  %v112 = vpop.f32.mrf.mxu0
  %v113 = vpop.f32.mrf.mxu0
  %v114 = vadd.f32 0.0, %v113
  %v115 = vpop.f32.mrf.mxu0
  %116 = vdwg.mxu0
  %v117 = vadd.f32 %v31, %v111
  %v118 = vadd.f32 %v32, %v114
  %vm119 = vcmask 261120
  %120 = vst.msk [vmem:[#allocation2] sm:$0xff] %vm119, %v117
  %121 = vst.msk [vmem:[#allocation2 + $0x8] sm:$0xff] %vm119, %v118
  // Predicated region
  $region30: #{roberta_regressor_forward.17} parent=0 // pred_check
    %p122 = pneg %p24
  $region31: #{roberta_regressor_forward.17} parent=0 // pred_check_branch
    %124 = sbr.rel (%p122) target = $region33
  $region32: #{roberta_regressor_forward.17} parent=0 // pred_region
    %v125 = vld [vmem:[#allocation2] sm:$0xff]
    %v126 = vld [vmem:[#allocation2 + $0x8] sm:$0xff]
    %v127 = vld [vmem:[%s2] sm:$0x1]
    %v129 = vlaneseq
    %v130 = vshrl.u32 %v129, 7
    %v131 = vsub.s32 0, %v130
    %v132 = vrot.slane %v127, %v131
    %v134 = vadd.f32 %v125, %v132
    %v135 = vadd.f32 %v126, %v132
    %v136 = vld [vmem:[%s3] sm:$0xf]
    %v137 = vld [vmem:[%s3 + $0x4] sm:$0xf]
    %v138 = vunpack.c.l.bf16 %v136
    %v139 = vunpack.c.l.bf16 %v137
    %v140 = vadd.f32 %v134, %v138
    %v141 = vadd.f32 %v135, %v139
    %v142 = vsel %vm119, %v140, 0.0
    %143 = vadd.xlane.f32.xlu0 %v142
    %v144 = vpop.xlane.xlu0 %143
    %v145 = vsel %vm119, %v141, 0.0
    %146 = vadd.xlane.f32.xlu0 %v145
    %v147 = vpop.xlane.xlu0 %146
    %v148 = vrcp.pop 32.0
    %v149 = vmul.f32 %v144, %v148
    %v150 = vmul.f32 %v147, %v148
    %v151 = vsub.f32 %v140, %v149
    %v152 = vsub.f32 %v141, %v150
    %v153 = vmul.f32 %v151, %v151
    %v154 = vmul.f32 %v152, %v152
    %v155 = vsel %vm119, %v153, 0.0
    %156 = vadd.xlane.f32.xlu0 %v155
    %v157 = vpop.xlane.xlu0 %156
    %v158 = vsel %vm119, %v154, 0.0
    %159 = vadd.xlane.f32.xlu0 %v158
    %v160 = vpop.xlane.xlu0 %159
    %v161 = vmul.f32 %v157, %v148
    %v162 = vmul.f32 %v160, %v148
    %v163 = vadd.f32 %v161, 1e-05
    %v164 = vadd.f32 %v162, 1e-05
    %v165 = vrsqrt.pop %v163
    %v166 = vrsqrt.pop %v164
    %v167 = vmul.f32 %v151, %v165
    %v168 = vmul.f32 %v152, %v166
    %v169 = vld [vmem:[%s4] sm:$0x1]
    %v171 = vlaneseq
    %v172 = vshrl.u32 %v171, 7
    %v173 = vsub.s32 0, %v172
    %v174 = vrot.slane %v169, %v173
    %v176 = vmul.f32 %v167, %v174
    %v177 = vmul.f32 %v168, %v174
    %v178 = vld [vmem:[%s5] sm:$0x1]
    %v180 = vlaneseq
    %v181 = vshrl.u32 %v180, 7
    %v182 = vsub.s32 0, %v181
    %v183 = vrot.slane %v178, %v182
    %v185 = vadd.f32 %v176, %v183
    %v186 = vadd.f32 %v177, %v183
    %v187 = vpack.c.bf16 %v186, %v185
    %v189 = vunpack.c.l.b16 %v187
    %v190 = vunpack.c.h.b16 %v187
    %v191 = vpack.c.b16 %v189, %v189
    %v192 = vpack.c.b16 %v190, %v190
    %vm195 = vcmask 257024
    %196 = vst.msk [vmem:[%s6] sm:$0xf] %vm195, %v191
    %197 = vst.msk [vmem:[%s6 + $0x4] sm:$0xf] %vm195, %v192
  $region33: #{roberta_regressor_forward.17} parent=0 // pred_fallthru
    _
  // Predicated region
  $region34: #{roberta_regressor_forward.17} parent=0 // pred_check
    _
  $region35: #{roberta_regressor_forward.17} parent=0 // pred_check_branch
    %199 = sbr.rel (0) target = $region37
  $region36: #{roberta_regressor_forward.17} parent=0 // pred_region
    _
  $region37: #{roberta_regressor_forward.17} parent=0 // pred_fallthru
    _
  // Predicated region
  $region38: #{roberta_regressor_forward.17} parent=0 // pred_check
    _
  $region39: #{roberta_regressor_forward.17} parent=0 // pred_check_branch
    %201 = sbr.rel (0) target = $region41
  $region40: #{roberta_regressor_forward.17} parent=0 // pred_region
    _
  $region41: #{roberta_regressor_forward.17} parent=0 // pred_fallthru
    _

// kernel: roberta_regressor_forward.23
$region0: #{roberta_regressor_forward.23}
  #allocation0 [shape = 'u32[]', space=smem, size = 0x4, offset = 0x4, fixed_abs, tag = 'smem constant byte address 0x4 - core index']
  #allocation1 [shape = 'u32[144,128]{1,0:T(1,128)}', space=vmem, size = 0x12000, scoped, tag = 'internal scratch']
  #allocation2 [shape = 'f32[1,1]{1,0:T(1,128)S(1)}', space=vmem, size = 0x200, scoped, tag = 'scoped memory for roberta_regressor_forward.23']
  %s0 = inlined_call_operand.vmem [shape: bf16[2,32], index: 0, kind: input, shape index: {}]
  %s1 = inlined_call_operand.vmem [shape: bf16[32,32], index: 1, kind: input, shape index: {}]
  %s2 = inlined_call_operand.vmem [shape: f32[1,32], index: 2, kind: input, shape index: {}]
  %s3 = inlined_call_operand.vmem [shape: bf16[32,1], index: 3, kind: input, shape index: {}]
  %s4 = inlined_call_operand.<no memory space> [shape: f32[1,1], index: 4, kind: input, shape index: {}]
  %s5 = inlined_call_operand.vmem [shape: f32[2,1], index: 5, kind: output, shape index: {}]
  %s6 = sld [smem:[#allocation0]]
  $region30: #{roberta_regressor_forward.23} parent=0
    _
  %s8 = ssub.s32 1, %s6
  %s9 = scalar_select 0, %s8, %s6
  %v10 = vstv %s4
  %11 = vst [vmem:[#allocation2] sm:$0x1] %v10
  // Predicated region
  $region2: #{roberta_regressor_forward.23} parent=0 // pred_check
    _
  $region3: #{roberta_regressor_forward.23} parent=0 // pred_check_branch
    %13 = sbr.rel (0) target = $region5
  $region4: #{roberta_regressor_forward.23} parent=0 // pred_region
    _
  $region5: #{roberta_regressor_forward.23} parent=0 // pred_fallthru
    _
  // Predicated region
  $region6: #{roberta_regressor_forward.23} parent=0 // pred_check
    _
  $region7: #{roberta_regressor_forward.23} parent=0 // pred_check_branch
    %15 = sbr.rel (0) target = $region9
  $region8: #{roberta_regressor_forward.23} parent=0 // pred_region
    _
  $region9: #{roberta_regressor_forward.23} parent=0 // pred_fallthru
    _
  // Predicated region
  $region10: #{roberta_regressor_forward.23} parent=0 // pred_check
    _
  $region11: #{roberta_regressor_forward.23} parent=0 // pred_check_branch
    %17 = sbr.rel (0) target = $region13
  $region12: #{roberta_regressor_forward.23} parent=0 // pred_region
    _
  $region13: #{roberta_regressor_forward.23} parent=0 // pred_fallthru
    _
  // Predicated region
  $region14: #{roberta_regressor_forward.23} parent=0 // pred_check
    _
  $region15: #{roberta_regressor_forward.23} parent=0 // pred_check_branch
    %19 = sbr.rel (0) target = $region17
  $region16: #{roberta_regressor_forward.23} parent=0 // pred_region
    _
  $region17: #{roberta_regressor_forward.23} parent=0 // pred_fallthru
    _
  // Predicated region
  $region18: #{roberta_regressor_forward.23} parent=0 // pred_check
    _
  $region19: #{roberta_regressor_forward.23} parent=0 // pred_check_branch
    %21 = sbr.rel (0) target = $region21
  $region20: #{roberta_regressor_forward.23} parent=0 // pred_region
    _
  $region21: #{roberta_regressor_forward.23} parent=0 // pred_fallthru
    _
  %v23 = vld [vmem:[%s0] sm:$0x1]
  %v24 = vld [vmem:[%s1] sm:$0xf]
  %v25 = vld [vmem:[%s1 + $0x4] sm:$0xf]
  %v26 = vld [vmem:[%s1 + $0x8] sm:$0xf]
  %v27 = vld [vmem:[%s1 + $0xc] sm:$0xf]
  %v28 = vld [vmem:[%s2] sm:$0x1]
  %v30 = vlaneseq
  %v31 = vshrl.u32 %v30, 7
  %v32 = vsub.s32 0, %v31
  %v33 = vrot.slane %v28, %v32
  %v39 = vunpack.c.l.b16 %v24
  %v40 = vunpack.c.l.b16 %v25
  %v41 = vunpack.c.l.b16 %v26
  %v42 = vunpack.c.l.b16 %v27
  %v43 = vpack.c.b16 %v40, %v39
  %v44 = vpack.c.b16 %v42, %v41
  %vm47 = vcmask 261120
  %v49 = vsel %vm47, %v23, 0
  %51 = vmatprep.subr.bf16.mxu0 0
  %52 = vmatpush1.bf16.msra.mxu0 0
  %53 = vmatprep.subr.bf16.mxu0 0
  %54 = vmatpush1.bf16.msra.mxu0 0
  %55 = vmatprep.subr.bf16.mxu0 0
  %56 = vmatpush1.bf16.msra.mxu0 0
  %57 = vmatprep.subr.bf16.mxu0 0
  %58 = vmatpush1.bf16.msra.mxu0 0
  %59 = vmatprep.subr.bf16.mxu0 0
  %60 = vmatpush1.bf16.msra.mxu0 0
  %61 = vmatprep.subr.bf16.mxu0 0
  %62 = vmatpush1.bf16.msra.mxu0 0
  %63 = vmatprep.subr.bf16.mxu0 0
  %64 = vmatpush1.bf16.msra.mxu0 %v44
  %65 = vmatprep.subr.bf16.mxu0 0
  %66 = vmatpush1.bf16.msra.mxu0 %v43
  %67 = vmatprep.subr.bf16.mxu0 0
  %68 = vmatpush2.bf16.msra.mxu0 0
  %69 = vmatprep.subr.bf16.mxu0 0
  %70 = vmatpush2.bf16.msra.mxu0 0
  %71 = vmatprep.subr.bf16.mxu0 0
  %72 = vmatpush2.bf16.msra.mxu0 0
  %73 = vmatprep.subr.bf16.mxu0 0
  %74 = vmatpush2.bf16.msra.mxu0 0
  %75 = vmatprep.subr.bf16.mxu0 0
  %76 = vmatpush2.bf16.msra.mxu0 0
  %77 = vmatprep.subr.bf16.mxu0 0
  %78 = vmatpush2.bf16.msra.mxu0 0
  %79 = vmatprep.subr.bf16.mxu0 0
  %80 = vmatpush2.bf16.msra.mxu0 0
  %81 = vmatprep.subr.bf16.mxu0 0
  %82 = vmatpush2.bf16.msra.mxu0 0
  %83 = vmatprep.mubr.bf16.mxu0 0
  %84 = vmatmul.mubr.bf16.gmra.mxu0 %v49
  %v85 = vpop.f32.mrf.mxu0
  %v86 = vadd.f32 %v33, %v85
  %v87 = vpop.f32.mrf.mxu0
  %v88 = vpop.f32.mrf.mxu0
  %v89 = vpop.f32.mrf.mxu0
  %90 = vdwg.mxu0
  %v91 = vtanh.pop %v86
  %v92 = vpack.c.bf16 %v91, %v91
  %v93 = vld [vmem:[%s3] sm:$0xf]
  %v94 = vld [vmem:[%s3 + $0x4] sm:$0xf]
  %v95 = vld [vmem:[%s3 + $0x8] sm:$0xf]
  %v96 = vld [vmem:[%s3 + $0xc] sm:$0xf]
  %v97 = vld [vmem:[#allocation2] sm:$0x1]
  %v99 = vlaneseq
  %v100 = vshrl.u32 %v99, 7
  %v101 = vsub.s32 0, %v100
  %v102 = vrot.slane %v97, %v101
  %v108 = vunpack.c.l.b16 %v93
  %v109 = vunpack.c.l.b16 %v94
  %v110 = vunpack.c.l.b16 %v95
  %v111 = vunpack.c.l.b16 %v96
  %v112 = vpack.c.b16 %v109, %v108
  %v113 = vpack.c.b16 %v111, %v110
  %v117 = vsel %vm47, %v92, 0
  %119 = vmatprep.subr.bf16.mxu0 0
  %120 = vmatpush1.bf16.msra.mxu0 0
  %121 = vmatprep.subr.bf16.mxu0 0
  %122 = vmatpush1.bf16.msra.mxu0 0
  %123 = vmatprep.subr.bf16.mxu0 0
  %124 = vmatpush1.bf16.msra.mxu0 0
  %125 = vmatprep.subr.bf16.mxu0 0
  %126 = vmatpush1.bf16.msra.mxu0 0
  %127 = vmatprep.subr.bf16.mxu0 0
  %128 = vmatpush1.bf16.msra.mxu0 0
  %129 = vmatprep.subr.bf16.mxu0 0
  %130 = vmatpush1.bf16.msra.mxu0 0
  %131 = vmatprep.subr.bf16.mxu0 0
  %132 = vmatpush1.bf16.msra.mxu0 %v113
  %133 = vmatprep.subr.bf16.mxu0 0
  %134 = vmatpush1.bf16.msra.mxu0 %v112
  %135 = vmatprep.subr.bf16.mxu0 0
  %136 = vmatpush2.bf16.msra.mxu0 0
  %137 = vmatprep.subr.bf16.mxu0 0
  %138 = vmatpush2.bf16.msra.mxu0 0
  %139 = vmatprep.subr.bf16.mxu0 0
  %140 = vmatpush2.bf16.msra.mxu0 0
  %141 = vmatprep.subr.bf16.mxu0 0
  %142 = vmatpush2.bf16.msra.mxu0 0
  %143 = vmatprep.subr.bf16.mxu0 0
  %144 = vmatpush2.bf16.msra.mxu0 0
  %145 = vmatprep.subr.bf16.mxu0 0
  %146 = vmatpush2.bf16.msra.mxu0 0
  %147 = vmatprep.subr.bf16.mxu0 0
  %148 = vmatpush2.bf16.msra.mxu0 0
  %149 = vmatprep.subr.bf16.mxu0 0
  %150 = vmatpush2.bf16.msra.mxu0 0
  %151 = vmatprep.mubr.bf16.mxu0 0
  %152 = vmatmul.mubr.bf16.gmra.mxu0 %v117
  %v153 = vpop.f32.mrf.mxu0
  %v154 = vadd.f32 %v102, %v153
  %v155 = vpop.f32.mrf.mxu0
  %v156 = vpop.f32.mrf.mxu0
  %v157 = vpop.f32.mrf.mxu0
  %158 = vdwg.mxu0
  %vm159 = vcmask 1024
  %160 = vst.msk [vmem:[%s5] sm:$0x3] %vm159, %v154
  // Predicated region
  $region22: #{roberta_regressor_forward.23} parent=0 // pred_check
    _
  $region23: #{roberta_regressor_forward.23} parent=0 // pred_check_branch
    %162 = sbr.rel (0) target = $region25
  $region24: #{roberta_regressor_forward.23} parent=0 // pred_region
    _
  $region25: #{roberta_regressor_forward.23} parent=0 // pred_fallthru
    _
  // Predicated region
  $region26: #{roberta_regressor_forward.23} parent=0 // pred_check
    _
  $region27: #{roberta_regressor_forward.23} parent=0 // pred_check_branch
    %164 = sbr.rel (0) target = $region29
  $region28: #{roberta_regressor_forward.23} parent=0 // pred_region
    _
  $region29: #{roberta_regressor_forward.23} parent=0 // pred_fallthru
    _

</llo_original>
